<compile_context>
chip_gen: v6e
topology: v6e:2x2x1
jax: 0.10.0
libtpu: 0.0.40
codegen_flags: <defaults>
</compile_context>

<pallas_src>
import math

import jax
import jax.numpy as jnp
from jax import lax
from jax.experimental import pallas as pl
from jax.experimental.pallas import tpu as pltpu

# ---------------- config (small synthetic shapes) ----------------
VOCAB = 100
HIDDEN = 32
HEADS = 2
HEAD_DIM = HIDDEN // HEADS
FFN = 64
LAYERS = 2
MAX_POS = 16
BATCH = 2
SEQ = 8
EPS = 1e-12          # BERT-style LayerNorm eps

HP = 128             # hidden padded to full lane width
FP = 128             # FFN padded to full lane width
BS = BATCH * SEQ     # flattened token rows


# ---------------- fused forward kernel ----------------
def fused_encoder_kernel(x_ref, bias_ref, embln_ref,
                         wqkv_ref, bqkv_ref, wo_ref, bo_ref, ln1_ref,
                         w1_ref, b1_ref, w2_ref, b2_ref, ln2_ref,
                         pw_ref, pb_ref, cw_ref, cb_ref, o_ref):
    inv_h = 1.0 / HIDDEN

    def layernorm(x, gb):
        # Single-pass mean / mean-of-squares over the REAL hidden size.
        # Padded lanes of x are zero, gamma/beta pads are zero -> pads stay 0.
        g = gb[0:1, :]
        b = gb[1:2, :]
        mu = jnp.sum(x, axis=-1, keepdims=True) * inv_h
        ms = jnp.sum(x * x, axis=-1, keepdims=True) * inv_h
        var = jnp.maximum(ms - mu * mu, 0.0)
        return (x - mu) * lax.rsqrt(var + EPS) * g + b

    def mm(a, w):
        # bf16 MXU matmul with f32 accumulation.
        return jnp.dot(a.astype(jnp.bfloat16), w.astype(jnp.bfloat16),
                       preferred_element_type=jnp.float32)

    def gelu(x):
        # tanh-approximate GELU (gelu_new).
        return 0.5 * x * (1.0 + jnp.tanh(
            0.7978845608028654 * (x + 0.044715 * x * x * x)))

    x = layernorm(x_ref[...], embln_ref[...])          # (BS, HP) embedding LN
    bias = bias_ref[...]                               # (BS, BS) additive mask
    col = lax.broadcasted_iota(jnp.int32, (1, HP), 1)  # lane ids for head masks
    scale = 1.0 / math.sqrt(HEAD_DIM)

    for l in range(LAYERS):                            # static loop, weights VMEM-resident
        # --- self attention (fused QKV, block-diagonal batch mask) ---
        qkv = mm(x, wqkv_ref[l]) + bqkv_ref[l]         # (BS, 3*HP)
        q = qkv[:, 0:HP] * scale                       # 128-lane-aligned slices
        k = qkv[:, HP:2 * HP]
        v = qkv[:, 2 * HP:3 * HP]
        ctx = jnp.zeros((BS, HP), jnp.float32)
        for h in range(HEADS):                         # static head loop
            hm = jnp.logical_and(col >= h * HEAD_DIM,
                                 col < (h + 1) * HEAD_DIM).astype(jnp.float32)
            s = lax.dot_general((q * hm).astype(jnp.bfloat16),
                                k.astype(jnp.bfloat16),
                                (((1,), (1,)), ((), ())),
                                preferred_element_type=jnp.float32) + bias
            s = s - jnp.max(s, axis=-1, keepdims=True)
            p = jnp.exp(s)
            p = p * pl.reciprocal(jnp.sum(p, axis=-1, keepdims=True), approx=True)
            ctx = ctx + mm(p, v * hm)                  # per-head ctx lands in head h's lanes
        attn = mm(ctx, wo_ref[l]) + bo_ref[l]
        h1 = layernorm(x + attn, ln1_ref[l])

        # --- feed forward ---
        ff = gelu(mm(h1, w1_ref[l]) + b1_ref[l])
        ff = mm(ff, w2_ref[l]) + b2_ref[l]
        x = layernorm(h1 + ff, ln2_ref[l])

    # --- pooler (CLS token) + classifier + sigmoid ---
    cls = jnp.concatenate([x[b * SEQ:b * SEQ + 1, :] for b in range(BATCH)],
                          axis=0)                      # (B, HP)
    pooled = jnp.tanh(mm(cls, pw_ref[...]) + pb_ref[...])
    logits = mm(pooled, cw_ref[...]) + cb_ref[...]     # (B, 128): logit replicated over lanes
    o_ref[...] = 1.0 / (1.0 + jnp.exp(-logits))        # sigmoid, lane-dense store


# ---------------- deterministic parameter init ----------------
def init_params(key):
    scale = 0.02
    ks = iter(jax.random.split(key, 8 + LAYERS * 8))
    nrm = lambda shape: scale * jax.random.normal(next(ks), shape, jnp.float32)

    params = {
        "tok_emb": nrm((VOCAB, HIDDEN)),
        "pos_emb": nrm((MAX_POS, HIDDEN)),
        "emb_ln_g": jnp.ones((1, HIDDEN), jnp.float32),
        "emb_ln_b": jnp.zeros((1, HIDDEN), jnp.float32),
        "pool_w": nrm((HIDDEN, HIDDEN)),
        "pool_b": jnp.zeros((1, HIDDEN), jnp.float32),
        "cls_w": nrm((HIDDEN, 1)),
        "cls_b": jnp.zeros((1, 1), jnp.float32),
        "layers": [],
    }
    for _ in range(LAYERS):
        lp = {
            "wq": nrm((HIDDEN, HIDDEN)), "bq": jnp.zeros((1, HIDDEN), jnp.float32),
            "wk": nrm((HIDDEN, HIDDEN)), "bk": jnp.zeros((1, HIDDEN), jnp.float32),
            "wv": nrm((HIDDEN, HIDDEN)), "bv": jnp.zeros((1, HIDDEN), jnp.float32),
            "wo": nrm((HIDDEN, HIDDEN)), "bo": jnp.zeros((1, HIDDEN), jnp.float32),
            "ln1_g": jnp.ones((1, HIDDEN), jnp.float32),
            "ln1_b": jnp.zeros((1, HIDDEN), jnp.float32),
            "w1": nrm((HIDDEN, FFN)), "b1": jnp.zeros((1, FFN), jnp.float32),
            "w2": nrm((FFN, HIDDEN)), "b2": jnp.zeros((1, HIDDEN), jnp.float32),
            "ln2_g": jnp.ones((1, HIDDEN), jnp.float32),
            "ln2_b": jnp.zeros((1, HIDDEN), jnp.float32),
        }
        params["layers"].append(lp)
    return params


# ---------------- wrapper-side weight padding / stacking ----------------
def _pad2(w, rows, cols):
    out = jnp.zeros((rows, cols), w.dtype)
    return out.at[:w.shape[0], :w.shape[1]].set(w)


def prepare_operands(params):
    bf = jnp.bfloat16
    embln = jnp.concatenate([_pad2(params["emb_ln_g"], 1, HP),
                             _pad2(params["emb_ln_b"], 1, HP)], axis=0)

    wqkv, bqkv, wo, bo, ln1 = [], [], [], [], []
    w1, b1, w2, b2, ln2 = [], [], [], [], []
    for lp in params["layers"]:
        wqkv.append(jnp.concatenate([_pad2(lp["wq"], HP, HP),
                                     _pad2(lp["wk"], HP, HP),
                                     _pad2(lp["wv"], HP, HP)], axis=1))
        bqkv.append(jnp.concatenate([_pad2(lp["bq"], 1, HP),
                                     _pad2(lp["bk"], 1, HP),
                                     _pad2(lp["bv"], 1, HP)], axis=1))
        wo.append(_pad2(lp["wo"], HP, HP))
        bo.append(_pad2(lp["bo"], 1, HP))
        ln1.append(jnp.concatenate([_pad2(lp["ln1_g"], 1, HP),
                                    _pad2(lp["ln1_b"], 1, HP)], axis=0))
        w1.append(_pad2(lp["w1"], HP, FP))
        b1.append(_pad2(lp["b1"], 1, FP))
        w2.append(_pad2(lp["w2"], FP, HP))
        b2.append(_pad2(lp["b2"], 1, HP))
        ln2.append(jnp.concatenate([_pad2(lp["ln2_g"], 1, HP),
                                    _pad2(lp["ln2_b"], 1, HP)], axis=0))
    stk = lambda xs: jnp.stack(xs, axis=0)

    return {
        "tok_emb": _pad2(params["tok_emb"], VOCAB, HP),
        "pos_emb": _pad2(params["pos_emb"], MAX_POS, HP),
        "embln": embln,
        "wqkv": stk(wqkv).astype(bf), "bqkv": stk(bqkv),
        "wo": stk(wo).astype(bf), "bo": stk(bo),
        "ln1": stk(ln1),
        "w1": stk(w1).astype(bf), "b1": stk(b1),
        "w2": stk(w2).astype(bf), "b2": stk(b2),
        "ln2": stk(ln2),
        "pw": _pad2(params["pool_w"], HP, HP).astype(bf),
        "pb": _pad2(params["pool_b"], 1, HP),
        # classifier weight replicated across 128 lanes -> lane-dense output
        "cw": _pad2(jnp.broadcast_to(params["cls_w"], (HIDDEN, 128)), HP, 128).astype(bf),
        "cb": jnp.broadcast_to(params["cls_b"], (1, 128)),
    }


# ---------------- forward (mirrors SRTitleClassifyTransformer.forward) ----------------
def sr_title_classify_forward(ops, input_ids_title, attention_mask_title):
    Bn, Sn = input_ids_title.shape
    # embedding gather + position add are plain-JAX glue; LN runs in-kernel
    tok = ops["tok_emb"][input_ids_title]                     # (B, S, HP)
    pos = ops["pos_emb"][:Sn][None, :, :]                     # (1, S, HP)
    x_emb = (tok + pos).reshape(Bn * Sn, HP)                  # (B*S, HP)

    # block-diagonal (per-batch) + padded-key additive attention bias,
    # computed once and reused by every layer inside the kernel
    mask = attention_mask_title.astype(jnp.float32)           # (B, S) 1=keep
    key_bias = ((1.0 - mask) * -1e9).reshape(Bn * Sn)
    batch_ids = jnp.repeat(jnp.arange(Bn), Sn)
    cross = jnp.where(batch_ids[:, None] == batch_ids[None, :], 0.0, -1e9)
    attn_bias = cross + key_bias[None, :]                     # (B*S, B*S)

    out = pl.pallas_call(
        fused_encoder_kernel,
        out_shape=jax.ShapeDtypeStruct((Bn, 128), jnp.float32),
        compiler_params=pltpu.CompilerParams(vmem_limit_bytes=32 * 1024 * 1024),
    )(x_emb, attn_bias, ops["embln"],
      ops["wqkv"], ops["bqkv"], ops["wo"], ops["bo"], ops["ln1"],
      ops["w1"], ops["b1"], ops["w2"], ops["b2"], ops["ln2"],
      ops["pw"], ops["pb"], ops["cw"], ops["cb"])
    # every lane holds the same probability; column 0 == sigmoid(logits).squeeze(1)
    return out[:, 0]


if __name__ == "__main__":
    key = jax.random.PRNGKey(0)
    k_param, k_ids = jax.random.split(key)

    params = init_params(k_param)
    ops = prepare_operands(params)

    input_ids_title = jax.random.randint(k_ids, (BATCH, SEQ), 0, VOCAB, dtype=jnp.int32)
    attention_mask_title = jnp.array(
        [[1, 1, 1, 1, 1, 1, 1, 1],
         [1, 1, 1, 1, 1, 0, 0, 0]], dtype=jnp.int32)          # second sample padded

    out = sr_title_classify_forward(ops, input_ids_title, attention_mask_title)
    out = jax.block_until_ready(out)
    assert out.shape == (BATCH,)
    assert bool(jnp.all((out >= 0.0) & (out <= 1.0)))
    print("KERNEL_OK")
</pallas_src>

<mosaic_0001>
module attributes {stable_mosaic.version = 11 : i64} {
  func.func @fused_encoder_kernel(%arg0: memref<16x128xf32, #tpu.memory_space<vmem>>, %arg1: memref<16x16xf32, #tpu.memory_space<vmem>>, %arg2: memref<2x128xf32, #tpu.memory_space<vmem>>, %arg3: memref<2x128x384xbf16, #tpu.memory_space<vmem>>, %arg4: memref<2x1x384xf32, #tpu.memory_space<vmem>>, %arg5: memref<2x128x128xbf16, #tpu.memory_space<vmem>>, %arg6: memref<2x1x128xf32, #tpu.memory_space<vmem>>, %arg7: memref<2x2x128xf32, #tpu.memory_space<vmem>>, %arg8: memref<2x128x128xbf16, #tpu.memory_space<vmem>>, %arg9: memref<2x1x128xf32, #tpu.memory_space<vmem>>, %arg10: memref<2x128x128xbf16, #tpu.memory_space<vmem>>, %arg11: memref<2x1x128xf32, #tpu.memory_space<vmem>>, %arg12: memref<2x2x128xf32, #tpu.memory_space<vmem>>, %arg13: memref<128x128xbf16, #tpu.memory_space<vmem>>, %arg14: memref<1x128xf32, #tpu.memory_space<vmem>>, %arg15: memref<128x128xbf16, #tpu.memory_space<vmem>>, %arg16: memref<1x128xf32, #tpu.memory_space<vmem>>, %arg17: memref<2x128xf32, #tpu.memory_space<vmem>>) attributes {dimension_semantics = [], scalar_prefetch = 0 : i64, scratch_operands = 0 : i64, tpu.core_type = #tpu.core_type<tc>} {
    %c0 = arith.constant 0 : index
    %c0_0 = arith.constant 0 : index
    %0 = vector.load %arg0[%c0, %c0_0] : memref<16x128xf32, #tpu.memory_space<vmem>>, vector<16x128xf32>
    %c0_1 = arith.constant 0 : index
    %c0_2 = arith.constant 0 : index
    %1 = vector.load %arg2[%c0_1, %c0_2] : memref<2x128xf32, #tpu.memory_space<vmem>>, vector<2x128xf32>
    %2 = vector.extract_strided_slice %1 {offsets = [0, 0], sizes = [1, 128], strides = [1, 1]} : vector<2x128xf32> to vector<1x128xf32>
    %3 = vector.extract_strided_slice %1 {offsets = [1, 0], sizes = [1, 128], strides = [1, 1]} : vector<2x128xf32> to vector<1x128xf32>
    %cst = arith.constant dense<0.000000e+00> : vector<16xf32>
    %4 = vector.multi_reduction <add>, %0, %cst [1] : vector<16x128xf32> to vector<16xf32>
    %5 = vector.shape_cast %4 : vector<16xf32> to vector<16x1xf32>
    %cst_3 = arith.constant 3.125000e-02 : f32
    %6 = vector.broadcast %cst_3 : f32 to vector<16x1xf32>
    %7 = arith.mulf %5, %6 : vector<16x1xf32>
    %8 = arith.mulf %0, %0 : vector<16x128xf32>
    %cst_4 = arith.constant dense<0.000000e+00> : vector<16xf32>
    %9 = vector.multi_reduction <add>, %8, %cst_4 [1] : vector<16x128xf32> to vector<16xf32>
    %10 = vector.shape_cast %9 : vector<16xf32> to vector<16x1xf32>
    %cst_5 = arith.constant 3.125000e-02 : f32
    %11 = vector.broadcast %cst_5 : f32 to vector<16x1xf32>
    %12 = arith.mulf %10, %11 : vector<16x1xf32>
    %13 = arith.mulf %7, %7 : vector<16x1xf32>
    %14 = arith.subf %12, %13 : vector<16x1xf32>
    %cst_6 = arith.constant 0.000000e+00 : f32
    %15 = vector.broadcast %cst_6 : f32 to vector<16x1xf32>
    %16 = arith.maximumf %14, %15 : vector<16x1xf32>
    %17 = vector.broadcast %7 : vector<16x1xf32> to vector<16x128xf32>
    %18 = arith.subf %0, %17 : vector<16x128xf32>
    %cst_7 = arith.constant 9.99999996E-13 : f32
    %19 = vector.broadcast %cst_7 : f32 to vector<16x1xf32>
    %20 = arith.addf %16, %19 : vector<16x1xf32>
    %21 = math.rsqrt %20 : vector<16x1xf32>
    %22 = vector.broadcast %21 : vector<16x1xf32> to vector<16x128xf32>
    %23 = arith.mulf %18, %22 : vector<16x128xf32>
    %24 = vector.broadcast %2 : vector<1x128xf32> to vector<16x128xf32>
    %25 = arith.mulf %23, %24 : vector<16x128xf32>
    %26 = vector.broadcast %3 : vector<1x128xf32> to vector<16x128xf32>
    %27 = arith.addf %25, %26 : vector<16x128xf32>
    %c0_8 = arith.constant 0 : index
    %c0_9 = arith.constant 0 : index
    %28 = vector.load %arg1[%c0_8, %c0_9] : memref<16x16xf32, #tpu.memory_space<vmem>>, vector<16x16xf32>
    %29 = tpu.iota {dimensions = array<i32: 1>} : vector<1x128xi32>
    %c0_10 = arith.constant 0 : index
    %c0_11 = arith.constant 0 : index
    %c0_12 = arith.constant 0 : index
    %30 = vector.load %arg3[%c0_10, %c0_11, %c0_12] : memref<2x128x384xbf16, #tpu.memory_space<vmem>>, vector<1x128x384xbf16>
    %31 = vector.shape_cast %30 : vector<1x128x384xbf16> to vector<128x384xbf16>
    %32 = arith.truncf %27 : vector<16x128xf32> to vector<16x128xbf16>
    %cst_13 = arith.constant dense<0.000000e+00> : vector<16x384xf32>
    %33 = tpu.matmul %32, %31, %cst_13 {dimension_numbers = #tpu.dot_dimension_numbers<[1], [0], [0], [1], [0, 0, 1, 1], [], []>} : vector<16x128xbf16>, vector<128x384xbf16>, vector<16x384xf32> -> vector<16x384xf32>
    %c0_14 = arith.constant 0 : index
    %c0_15 = arith.constant 0 : index
    %c0_16 = arith.constant 0 : index
    %34 = vector.load %arg4[%c0_14, %c0_15, %c0_16] : memref<2x1x384xf32, #tpu.memory_space<vmem>>, vector<1x1x384xf32>
    %35 = vector.shape_cast %34 : vector<1x1x384xf32> to vector<1x384xf32>
    %36 = vector.broadcast %35 : vector<1x384xf32> to vector<16x384xf32>
    %37 = arith.addf %33, %36 : vector<16x384xf32>
    %38 = vector.extract_strided_slice %37 {offsets = [0, 0], sizes = [16, 128], strides = [1, 1]} : vector<16x384xf32> to vector<16x128xf32>
    %cst_17 = arith.constant 2.500000e-01 : f32
    %39 = vector.broadcast %cst_17 : f32 to vector<16x128xf32>
    %40 = arith.mulf %38, %39 : vector<16x128xf32>
    %41 = vector.extract_strided_slice %37 {offsets = [0, 128], sizes = [16, 128], strides = [1, 1]} : vector<16x384xf32> to vector<16x128xf32>
    %42 = vector.extract_strided_slice %37 {offsets = [0, 256], sizes = [16, 128], strides = [1, 1]} : vector<16x384xf32> to vector<16x128xf32>
    %cst_18 = arith.constant 0.000000e+00 : f32
    %43 = vector.broadcast %cst_18 : f32 to vector<16x128xf32>
    %c0_i32 = arith.constant 0 : i32
    %44 = vector.broadcast %c0_i32 : i32 to vector<1x128xi32>
    %45 = arith.cmpi sge, %29, %44 : vector<1x128xi32>
    %c16_i32 = arith.constant 16 : i32
    %46 = vector.broadcast %c16_i32 : i32 to vector<1x128xi32>
    %47 = arith.cmpi slt, %29, %46 : vector<1x128xi32>
    %48 = arith.andi %45, %47 : vector<1x128xi1>
    %49 = arith.extui %48 : vector<1x128xi1> to vector<1x128xi32>
    %50 = arith.sitofp %49 : vector<1x128xi32> to vector<1x128xf32>
    %51 = vector.broadcast %50 : vector<1x128xf32> to vector<16x128xf32>
    %52 = arith.mulf %40, %51 : vector<16x128xf32>
    %53 = arith.truncf %52 : vector<16x128xf32> to vector<16x128xbf16>
    %54 = arith.truncf %41 : vector<16x128xf32> to vector<16x128xbf16>
    %cst_19 = arith.constant dense<0.000000e+00> : vector<16x16xf32>
    %55 = tpu.matmul %53, %54, %cst_19 {dimension_numbers = #tpu.dot_dimension_numbers<[1], [1], [0], [0], [0, 0, 1, 0], [], []>} : vector<16x128xbf16>, vector<16x128xbf16>, vector<16x16xf32> -> vector<16x16xf32>
    %56 = arith.addf %55, %28 : vector<16x16xf32>
    %cst_20 = arith.constant dense<0xFF800000> : vector<16xf32>
    %57 = vector.multi_reduction <maximumf>, %56, %cst_20 [1] : vector<16x16xf32> to vector<16xf32>
    %58 = vector.shape_cast %57 : vector<16xf32> to vector<16x1xf32>
    %59 = vector.broadcast %58 : vector<16x1xf32> to vector<16x16xf32>
    %60 = arith.subf %56, %59 : vector<16x16xf32>
    %61 = math.exp %60 : vector<16x16xf32>
    %cst_21 = arith.constant dense<0.000000e+00> : vector<16xf32>
    %62 = vector.multi_reduction <add>, %61, %cst_21 [1] : vector<16x16xf32> to vector<16xf32>
    %63 = vector.shape_cast %62 : vector<16xf32> to vector<16x1xf32>
    %64 = tpu.reciprocal %63 {approx = true} : vector<16x1xf32> -> vector<16x1xf32>
    %65 = vector.broadcast %64 : vector<16x1xf32> to vector<16x16xf32>
    %66 = arith.mulf %61, %65 : vector<16x16xf32>
    %67 = vector.broadcast %50 : vector<1x128xf32> to vector<16x128xf32>
    %68 = arith.mulf %42, %67 : vector<16x128xf32>
    %69 = arith.truncf %66 : vector<16x16xf32> to vector<16x16xbf16>
    %70 = arith.truncf %68 : vector<16x128xf32> to vector<16x128xbf16>
    %cst_22 = arith.constant dense<0.000000e+00> : vector<16x128xf32>
    %71 = tpu.matmul %69, %70, %cst_22 {dimension_numbers = #tpu.dot_dimension_numbers<[1], [0], [0], [1], [0, 0, 1, 1], [], []>} : vector<16x16xbf16>, vector<16x128xbf16>, vector<16x128xf32> -> vector<16x128xf32>
    %72 = arith.addf %43, %71 : vector<16x128xf32>
    %c16_i32_23 = arith.constant 16 : i32
    %73 = vector.broadcast %c16_i32_23 : i32 to vector<1x128xi32>
    %74 = arith.cmpi sge, %29, %73 : vector<1x128xi32>
    %c32_i32 = arith.constant 32 : i32
    %75 = vector.broadcast %c32_i32 : i32 to vector<1x128xi32>
    %76 = arith.cmpi slt, %29, %75 : vector<1x128xi32>
    %77 = arith.andi %74, %76 : vector<1x128xi1>
    %78 = arith.extui %77 : vector<1x128xi1> to vector<1x128xi32>
    %79 = arith.sitofp %78 : vector<1x128xi32> to vector<1x128xf32>
    %80 = vector.broadcast %79 : vector<1x128xf32> to vector<16x128xf32>
    %81 = arith.mulf %40, %80 : vector<16x128xf32>
    %82 = arith.truncf %81 : vector<16x128xf32> to vector<16x128xbf16>
    %83 = arith.truncf %41 : vector<16x128xf32> to vector<16x128xbf16>
    %cst_24 = arith.constant dense<0.000000e+00> : vector<16x16xf32>
    %84 = tpu.matmul %82, %83, %cst_24 {dimension_numbers = #tpu.dot_dimension_numbers<[1], [1], [0], [0], [0, 0, 1, 0], [], []>} : vector<16x128xbf16>, vector<16x128xbf16>, vector<16x16xf32> -> vector<16x16xf32>
    %85 = arith.addf %84, %28 : vector<16x16xf32>
    %cst_25 = arith.constant dense<0xFF800000> : vector<16xf32>
    %86 = vector.multi_reduction <maximumf>, %85, %cst_25 [1] : vector<16x16xf32> to vector<16xf32>
    %87 = vector.shape_cast %86 : vector<16xf32> to vector<16x1xf32>
    %88 = vector.broadcast %87 : vector<16x1xf32> to vector<16x16xf32>
    %89 = arith.subf %85, %88 : vector<16x16xf32>
    %90 = math.exp %89 : vector<16x16xf32>
    %cst_26 = arith.constant dense<0.000000e+00> : vector<16xf32>
    %91 = vector.multi_reduction <add>, %90, %cst_26 [1] : vector<16x16xf32> to vector<16xf32>
    %92 = vector.shape_cast %91 : vector<16xf32> to vector<16x1xf32>
    %93 = tpu.reciprocal %92 {approx = true} : vector<16x1xf32> -> vector<16x1xf32>
    %94 = vector.broadcast %93 : vector<16x1xf32> to vector<16x16xf32>
    %95 = arith.mulf %90, %94 : vector<16x16xf32>
    %96 = vector.broadcast %79 : vector<1x128xf32> to vector<16x128xf32>
    %97 = arith.mulf %42, %96 : vector<16x128xf32>
    %98 = arith.truncf %95 : vector<16x16xf32> to vector<16x16xbf16>
    %99 = arith.truncf %97 : vector<16x128xf32> to vector<16x128xbf16>
    %cst_27 = arith.constant dense<0.000000e+00> : vector<16x128xf32>
    %100 = tpu.matmul %98, %99, %cst_27 {dimension_numbers = #tpu.dot_dimension_numbers<[1], [0], [0], [1], [0, 0, 1, 1], [], []>} : vector<16x16xbf16>, vector<16x128xbf16>, vector<16x128xf32> -> vector<16x128xf32>
    %101 = arith.addf %72, %100 : vector<16x128xf32>
    %c0_28 = arith.constant 0 : index
    %c0_29 = arith.constant 0 : index
    %c0_30 = arith.constant 0 : index
    %102 = vector.load %arg5[%c0_28, %c0_29, %c0_30] : memref<2x128x128xbf16, #tpu.memory_space<vmem>>, vector<1x128x128xbf16>
    %103 = vector.shape_cast %102 : vector<1x128x128xbf16> to vector<128x128xbf16>
    %104 = arith.truncf %101 : vector<16x128xf32> to vector<16x128xbf16>
    %cst_31 = arith.constant dense<0.000000e+00> : vector<16x128xf32>
    %105 = tpu.matmul %104, %103, %cst_31 {dimension_numbers = #tpu.dot_dimension_numbers<[1], [0], [0], [1], [0, 0, 1, 1], [], []>} : vector<16x128xbf16>, vector<128x128xbf16>, vector<16x128xf32> -> vector<16x128xf32>
    %c0_32 = arith.constant 0 : index
    %c0_33 = arith.constant 0 : index
    %c0_34 = arith.constant 0 : index
    %106 = vector.load %arg6[%c0_32, %c0_33, %c0_34] : memref<2x1x128xf32, #tpu.memory_space<vmem>>, vector<1x1x128xf32>
    %107 = vector.shape_cast %106 : vector<1x1x128xf32> to vector<1x128xf32>
    %108 = vector.broadcast %107 : vector<1x128xf32> to vector<16x128xf32>
    %109 = arith.addf %105, %108 : vector<16x128xf32>
    %110 = arith.addf %27, %109 : vector<16x128xf32>
    %c0_35 = arith.constant 0 : index
    %c0_36 = arith.constant 0 : index
    %c0_37 = arith.constant 0 : index
    %111 = vector.load %arg7[%c0_35, %c0_36, %c0_37] : memref<2x2x128xf32, #tpu.memory_space<vmem>>, vector<1x2x128xf32>
    %112 = vector.shape_cast %111 : vector<1x2x128xf32> to vector<2x128xf32>
    %113 = vector.extract_strided_slice %112 {offsets = [0, 0], sizes = [1, 128], strides = [1, 1]} : vector<2x128xf32> to vector<1x128xf32>
    %114 = vector.extract_strided_slice %112 {offsets = [1, 0], sizes = [1, 128], strides = [1, 1]} : vector<2x128xf32> to vector<1x128xf32>
    %cst_38 = arith.constant dense<0.000000e+00> : vector<16xf32>
    %115 = vector.multi_reduction <add>, %110, %cst_38 [1] : vector<16x128xf32> to vector<16xf32>
    %116 = vector.shape_cast %115 : vector<16xf32> to vector<16x1xf32>
    %cst_39 = arith.constant 3.125000e-02 : f32
    %117 = vector.broadcast %cst_39 : f32 to vector<16x1xf32>
    %118 = arith.mulf %116, %117 : vector<16x1xf32>
    %119 = arith.mulf %110, %110 : vector<16x128xf32>
    %cst_40 = arith.constant dense<0.000000e+00> : vector<16xf32>
    %120 = vector.multi_reduction <add>, %119, %cst_40 [1] : vector<16x128xf32> to vector<16xf32>
    %121 = vector.shape_cast %120 : vector<16xf32> to vector<16x1xf32>
    %cst_41 = arith.constant 3.125000e-02 : f32
    %122 = vector.broadcast %cst_41 : f32 to vector<16x1xf32>
    %123 = arith.mulf %121, %122 : vector<16x1xf32>
    %124 = arith.mulf %118, %118 : vector<16x1xf32>
    %125 = arith.subf %123, %124 : vector<16x1xf32>
    %cst_42 = arith.constant 0.000000e+00 : f32
    %126 = vector.broadcast %cst_42 : f32 to vector<16x1xf32>
    %127 = arith.maximumf %125, %126 : vector<16x1xf32>
    %128 = vector.broadcast %118 : vector<16x1xf32> to vector<16x128xf32>
    %129 = arith.subf %110, %128 : vector<16x128xf32>
    %cst_43 = arith.constant 9.99999996E-13 : f32
    %130 = vector.broadcast %cst_43 : f32 to vector<16x1xf32>
    %131 = arith.addf %127, %130 : vector<16x1xf32>
    %132 = math.rsqrt %131 : vector<16x1xf32>
    %133 = vector.broadcast %132 : vector<16x1xf32> to vector<16x128xf32>
    %134 = arith.mulf %129, %133 : vector<16x128xf32>
    %135 = vector.broadcast %113 : vector<1x128xf32> to vector<16x128xf32>
    %136 = arith.mulf %134, %135 : vector<16x128xf32>
    %137 = vector.broadcast %114 : vector<1x128xf32> to vector<16x128xf32>
    %138 = arith.addf %136, %137 : vector<16x128xf32>
    %c0_44 = arith.constant 0 : index
    %c0_45 = arith.constant 0 : index
    %c0_46 = arith.constant 0 : index
    %139 = vector.load %arg8[%c0_44, %c0_45, %c0_46] : memref<2x128x128xbf16, #tpu.memory_space<vmem>>, vector<1x128x128xbf16>
    %140 = vector.shape_cast %139 : vector<1x128x128xbf16> to vector<128x128xbf16>
    %141 = arith.truncf %138 : vector<16x128xf32> to vector<16x128xbf16>
    %cst_47 = arith.constant dense<0.000000e+00> : vector<16x128xf32>
    %142 = tpu.matmul %141, %140, %cst_47 {dimension_numbers = #tpu.dot_dimension_numbers<[1], [0], [0], [1], [0, 0, 1, 1], [], []>} : vector<16x128xbf16>, vector<128x128xbf16>, vector<16x128xf32> -> vector<16x128xf32>
    %c0_48 = arith.constant 0 : index
    %c0_49 = arith.constant 0 : index
    %c0_50 = arith.constant 0 : index
    %143 = vector.load %arg9[%c0_48, %c0_49, %c0_50] : memref<2x1x128xf32, #tpu.memory_space<vmem>>, vector<1x1x128xf32>
    %144 = vector.shape_cast %143 : vector<1x1x128xf32> to vector<1x128xf32>
    %145 = vector.broadcast %144 : vector<1x128xf32> to vector<16x128xf32>
    %146 = arith.addf %142, %145 : vector<16x128xf32>
    %cst_51 = arith.constant 5.000000e-01 : f32
    %147 = vector.broadcast %cst_51 : f32 to vector<16x128xf32>
    %148 = arith.mulf %147, %146 : vector<16x128xf32>
    %cst_52 = arith.constant 4.471500e-02 : f32
    %149 = vector.broadcast %cst_52 : f32 to vector<16x128xf32>
    %150 = arith.mulf %149, %146 : vector<16x128xf32>
    %151 = arith.mulf %150, %146 : vector<16x128xf32>
    %152 = arith.mulf %151, %146 : vector<16x128xf32>
    %153 = arith.addf %146, %152 : vector<16x128xf32>
    %cst_53 = arith.constant 0.797884583 : f32
    %154 = vector.broadcast %cst_53 : f32 to vector<16x128xf32>
    %155 = arith.mulf %154, %153 : vector<16x128xf32>
    %156 = math.tanh %155 : vector<16x128xf32>
    %cst_54 = arith.constant 1.000000e+00 : f32
    %157 = vector.broadcast %cst_54 : f32 to vector<16x128xf32>
    %158 = arith.addf %157, %156 : vector<16x128xf32>
    %159 = arith.mulf %148, %158 : vector<16x128xf32>
    %c0_55 = arith.constant 0 : index
    %c0_56 = arith.constant 0 : index
    %c0_57 = arith.constant 0 : index
    %160 = vector.load %arg10[%c0_55, %c0_56, %c0_57] : memref<2x128x128xbf16, #tpu.memory_space<vmem>>, vector<1x128x128xbf16>
    %161 = vector.shape_cast %160 : vector<1x128x128xbf16> to vector<128x128xbf16>
    %162 = arith.truncf %159 : vector<16x128xf32> to vector<16x128xbf16>
    %cst_58 = arith.constant dense<0.000000e+00> : vector<16x128xf32>
    %163 = tpu.matmul %162, %161, %cst_58 {dimension_numbers = #tpu.dot_dimension_numbers<[1], [0], [0], [1], [0, 0, 1, 1], [], []>} : vector<16x128xbf16>, vector<128x128xbf16>, vector<16x128xf32> -> vector<16x128xf32>
    %c0_59 = arith.constant 0 : index
    %c0_60 = arith.constant 0 : index
    %c0_61 = arith.constant 0 : index
    %164 = vector.load %arg11[%c0_59, %c0_60, %c0_61] : memref<2x1x128xf32, #tpu.memory_space<vmem>>, vector<1x1x128xf32>
    %165 = vector.shape_cast %164 : vector<1x1x128xf32> to vector<1x128xf32>
    %166 = vector.broadcast %165 : vector<1x128xf32> to vector<16x128xf32>
    %167 = arith.addf %163, %166 : vector<16x128xf32>
    %168 = arith.addf %138, %167 : vector<16x128xf32>
    %c0_62 = arith.constant 0 : index
    %c0_63 = arith.constant 0 : index
    %c0_64 = arith.constant 0 : index
    %169 = vector.load %arg12[%c0_62, %c0_63, %c0_64] : memref<2x2x128xf32, #tpu.memory_space<vmem>>, vector<1x2x128xf32>
    %170 = vector.shape_cast %169 : vector<1x2x128xf32> to vector<2x128xf32>
    %171 = vector.extract_strided_slice %170 {offsets = [0, 0], sizes = [1, 128], strides = [1, 1]} : vector<2x128xf32> to vector<1x128xf32>
    %172 = vector.extract_strided_slice %170 {offsets = [1, 0], sizes = [1, 128], strides = [1, 1]} : vector<2x128xf32> to vector<1x128xf32>
    %cst_65 = arith.constant dense<0.000000e+00> : vector<16xf32>
    %173 = vector.multi_reduction <add>, %168, %cst_65 [1] : vector<16x128xf32> to vector<16xf32>
    %174 = vector.shape_cast %173 : vector<16xf32> to vector<16x1xf32>
    %cst_66 = arith.constant 3.125000e-02 : f32
    %175 = vector.broadcast %cst_66 : f32 to vector<16x1xf32>
    %176 = arith.mulf %174, %175 : vector<16x1xf32>
    %177 = arith.mulf %168, %168 : vector<16x128xf32>
    %cst_67 = arith.constant dense<0.000000e+00> : vector<16xf32>
    %178 = vector.multi_reduction <add>, %177, %cst_67 [1] : vector<16x128xf32> to vector<16xf32>
    %179 = vector.shape_cast %178 : vector<16xf32> to vector<16x1xf32>
    %cst_68 = arith.constant 3.125000e-02 : f32
    %180 = vector.broadcast %cst_68 : f32 to vector<16x1xf32>
    %181 = arith.mulf %179, %180 : vector<16x1xf32>
    %182 = arith.mulf %176, %176 : vector<16x1xf32>
    %183 = arith.subf %181, %182 : vector<16x1xf32>
    %cst_69 = arith.constant 0.000000e+00 : f32
    %184 = vector.broadcast %cst_69 : f32 to vector<16x1xf32>
    %185 = arith.maximumf %183, %184 : vector<16x1xf32>
    %186 = vector.broadcast %176 : vector<16x1xf32> to vector<16x128xf32>
    %187 = arith.subf %168, %186 : vector<16x128xf32>
    %cst_70 = arith.constant 9.99999996E-13 : f32
    %188 = vector.broadcast %cst_70 : f32 to vector<16x1xf32>
    %189 = arith.addf %185, %188 : vector<16x1xf32>
    %190 = math.rsqrt %189 : vector<16x1xf32>
    %191 = vector.broadcast %190 : vector<16x1xf32> to vector<16x128xf32>
    %192 = arith.mulf %187, %191 : vector<16x128xf32>
    %193 = vector.broadcast %171 : vector<1x128xf32> to vector<16x128xf32>
    %194 = arith.mulf %192, %193 : vector<16x128xf32>
    %195 = vector.broadcast %172 : vector<1x128xf32> to vector<16x128xf32>
    %196 = arith.addf %194, %195 : vector<16x128xf32>
    %c1 = arith.constant 1 : index
    %c0_71 = arith.constant 0 : index
    %c0_72 = arith.constant 0 : index
    %197 = vector.load %arg3[%c1, %c0_71, %c0_72] : memref<2x128x384xbf16, #tpu.memory_space<vmem>>, vector<1x128x384xbf16>
    %198 = vector.shape_cast %197 : vector<1x128x384xbf16> to vector<128x384xbf16>
    %199 = arith.truncf %196 : vector<16x128xf32> to vector<16x128xbf16>
    %cst_73 = arith.constant dense<0.000000e+00> : vector<16x384xf32>
    %200 = tpu.matmul %199, %198, %cst_73 {dimension_numbers = #tpu.dot_dimension_numbers<[1], [0], [0], [1], [0, 0, 1, 1], [], []>} : vector<16x128xbf16>, vector<128x384xbf16>, vector<16x384xf32> -> vector<16x384xf32>
    %c1_74 = arith.constant 1 : index
    %c0_75 = arith.constant 0 : index
    %c0_76 = arith.constant 0 : index
    %201 = vector.load %arg4[%c1_74, %c0_75, %c0_76] : memref<2x1x384xf32, #tpu.memory_space<vmem>>, vector<1x1x384xf32>
    %202 = vector.shape_cast %201 : vector<1x1x384xf32> to vector<1x384xf32>
    %203 = vector.broadcast %202 : vector<1x384xf32> to vector<16x384xf32>
    %204 = arith.addf %200, %203 : vector<16x384xf32>
    %205 = vector.extract_strided_slice %204 {offsets = [0, 0], sizes = [16, 128], strides = [1, 1]} : vector<16x384xf32> to vector<16x128xf32>
    %cst_77 = arith.constant 2.500000e-01 : f32
    %206 = vector.broadcast %cst_77 : f32 to vector<16x128xf32>
    %207 = arith.mulf %205, %206 : vector<16x128xf32>
    %208 = vector.extract_strided_slice %204 {offsets = [0, 128], sizes = [16, 128], strides = [1, 1]} : vector<16x384xf32> to vector<16x128xf32>
    %209 = vector.extract_strided_slice %204 {offsets = [0, 256], sizes = [16, 128], strides = [1, 1]} : vector<16x384xf32> to vector<16x128xf32>
    %cst_78 = arith.constant 0.000000e+00 : f32
    %210 = vector.broadcast %cst_78 : f32 to vector<16x128xf32>
    %c0_i32_79 = arith.constant 0 : i32
    %211 = vector.broadcast %c0_i32_79 : i32 to vector<1x128xi32>
    %212 = arith.cmpi sge, %29, %211 : vector<1x128xi32>
    %c16_i32_80 = arith.constant 16 : i32
    %213 = vector.broadcast %c16_i32_80 : i32 to vector<1x128xi32>
    %214 = arith.cmpi slt, %29, %213 : vector<1x128xi32>
    %215 = arith.andi %212, %214 : vector<1x128xi1>
    %216 = arith.extui %215 : vector<1x128xi1> to vector<1x128xi32>
    %217 = arith.sitofp %216 : vector<1x128xi32> to vector<1x128xf32>
    %218 = vector.broadcast %217 : vector<1x128xf32> to vector<16x128xf32>
    %219 = arith.mulf %207, %218 : vector<16x128xf32>
    %220 = arith.truncf %219 : vector<16x128xf32> to vector<16x128xbf16>
    %221 = arith.truncf %208 : vector<16x128xf32> to vector<16x128xbf16>
    %cst_81 = arith.constant dense<0.000000e+00> : vector<16x16xf32>
    %222 = tpu.matmul %220, %221, %cst_81 {dimension_numbers = #tpu.dot_dimension_numbers<[1], [1], [0], [0], [0, 0, 1, 0], [], []>} : vector<16x128xbf16>, vector<16x128xbf16>, vector<16x16xf32> -> vector<16x16xf32>
    %223 = arith.addf %222, %28 : vector<16x16xf32>
    %cst_82 = arith.constant dense<0xFF800000> : vector<16xf32>
    %224 = vector.multi_reduction <maximumf>, %223, %cst_82 [1] : vector<16x16xf32> to vector<16xf32>
    %225 = vector.shape_cast %224 : vector<16xf32> to vector<16x1xf32>
    %226 = vector.broadcast %225 : vector<16x1xf32> to vector<16x16xf32>
    %227 = arith.subf %223, %226 : vector<16x16xf32>
    %228 = math.exp %227 : vector<16x16xf32>
    %cst_83 = arith.constant dense<0.000000e+00> : vector<16xf32>
    %229 = vector.multi_reduction <add>, %228, %cst_83 [1] : vector<16x16xf32> to vector<16xf32>
    %230 = vector.shape_cast %229 : vector<16xf32> to vector<16x1xf32>
    %231 = tpu.reciprocal %230 {approx = true} : vector<16x1xf32> -> vector<16x1xf32>
    %232 = vector.broadcast %231 : vector<16x1xf32> to vector<16x16xf32>
    %233 = arith.mulf %228, %232 : vector<16x16xf32>
    %234 = vector.broadcast %217 : vector<1x128xf32> to vector<16x128xf32>
    %235 = arith.mulf %209, %234 : vector<16x128xf32>
    %236 = arith.truncf %233 : vector<16x16xf32> to vector<16x16xbf16>
    %237 = arith.truncf %235 : vector<16x128xf32> to vector<16x128xbf16>
    %cst_84 = arith.constant dense<0.000000e+00> : vector<16x128xf32>
    %238 = tpu.matmul %236, %237, %cst_84 {dimension_numbers = #tpu.dot_dimension_numbers<[1], [0], [0], [1], [0, 0, 1, 1], [], []>} : vector<16x16xbf16>, vector<16x128xbf16>, vector<16x128xf32> -> vector<16x128xf32>
    %239 = arith.addf %210, %238 : vector<16x128xf32>
    %c16_i32_85 = arith.constant 16 : i32
    %240 = vector.broadcast %c16_i32_85 : i32 to vector<1x128xi32>
    %241 = arith.cmpi sge, %29, %240 : vector<1x128xi32>
    %c32_i32_86 = arith.constant 32 : i32
    %242 = vector.broadcast %c32_i32_86 : i32 to vector<1x128xi32>
    %243 = arith.cmpi slt, %29, %242 : vector<1x128xi32>
    %244 = arith.andi %241, %243 : vector<1x128xi1>
    %245 = arith.extui %244 : vector<1x128xi1> to vector<1x128xi32>
    %246 = arith.sitofp %245 : vector<1x128xi32> to vector<1x128xf32>
    %247 = vector.broadcast %246 : vector<1x128xf32> to vector<16x128xf32>
    %248 = arith.mulf %207, %247 : vector<16x128xf32>
    %249 = arith.truncf %248 : vector<16x128xf32> to vector<16x128xbf16>
    %250 = arith.truncf %208 : vector<16x128xf32> to vector<16x128xbf16>
    %cst_87 = arith.constant dense<0.000000e+00> : vector<16x16xf32>
    %251 = tpu.matmul %249, %250, %cst_87 {dimension_numbers = #tpu.dot_dimension_numbers<[1], [1], [0], [0], [0, 0, 1, 0], [], []>} : vector<16x128xbf16>, vector<16x128xbf16>, vector<16x16xf32> -> vector<16x16xf32>
    %252 = arith.addf %251, %28 : vector<16x16xf32>
    %cst_88 = arith.constant dense<0xFF800000> : vector<16xf32>
    %253 = vector.multi_reduction <maximumf>, %252, %cst_88 [1] : vector<16x16xf32> to vector<16xf32>
    %254 = vector.shape_cast %253 : vector<16xf32> to vector<16x1xf32>
    %255 = vector.broadcast %254 : vector<16x1xf32> to vector<16x16xf32>
    %256 = arith.subf %252, %255 : vector<16x16xf32>
    %257 = math.exp %256 : vector<16x16xf32>
    %cst_89 = arith.constant dense<0.000000e+00> : vector<16xf32>
    %258 = vector.multi_reduction <add>, %257, %cst_89 [1] : vector<16x16xf32> to vector<16xf32>
    %259 = vector.shape_cast %258 : vector<16xf32> to vector<16x1xf32>
    %260 = tpu.reciprocal %259 {approx = true} : vector<16x1xf32> -> vector<16x1xf32>
    %261 = vector.broadcast %260 : vector<16x1xf32> to vector<16x16xf32>
    %262 = arith.mulf %257, %261 : vector<16x16xf32>
    %263 = vector.broadcast %246 : vector<1x128xf32> to vector<16x128xf32>
    %264 = arith.mulf %209, %263 : vector<16x128xf32>
    %265 = arith.truncf %262 : vector<16x16xf32> to vector<16x16xbf16>
    %266 = arith.truncf %264 : vector<16x128xf32> to vector<16x128xbf16>
    %cst_90 = arith.constant dense<0.000000e+00> : vector<16x128xf32>
    %267 = tpu.matmul %265, %266, %cst_90 {dimension_numbers = #tpu.dot_dimension_numbers<[1], [0], [0], [1], [0, 0, 1, 1], [], []>} : vector<16x16xbf16>, vector<16x128xbf16>, vector<16x128xf32> -> vector<16x128xf32>
    %268 = arith.addf %239, %267 : vector<16x128xf32>
    %c1_91 = arith.constant 1 : index
    %c0_92 = arith.constant 0 : index
    %c0_93 = arith.constant 0 : index
    %269 = vector.load %arg5[%c1_91, %c0_92, %c0_93] : memref<2x128x128xbf16, #tpu.memory_space<vmem>>, vector<1x128x128xbf16>
    %270 = vector.shape_cast %269 : vector<1x128x128xbf16> to vector<128x128xbf16>
    %271 = arith.truncf %268 : vector<16x128xf32> to vector<16x128xbf16>
    %cst_94 = arith.constant dense<0.000000e+00> : vector<16x128xf32>
    %272 = tpu.matmul %271, %270, %cst_94 {dimension_numbers = #tpu.dot_dimension_numbers<[1], [0], [0], [1], [0, 0, 1, 1], [], []>} : vector<16x128xbf16>, vector<128x128xbf16>, vector<16x128xf32> -> vector<16x128xf32>
    %c1_95 = arith.constant 1 : index
    %c0_96 = arith.constant 0 : index
    %c0_97 = arith.constant 0 : index
    %273 = vector.load %arg6[%c1_95, %c0_96, %c0_97] : memref<2x1x128xf32, #tpu.memory_space<vmem>>, vector<1x1x128xf32>
    %274 = vector.shape_cast %273 : vector<1x1x128xf32> to vector<1x128xf32>
    %275 = vector.broadcast %274 : vector<1x128xf32> to vector<16x128xf32>
    %276 = arith.addf %272, %275 : vector<16x128xf32>
    %277 = arith.addf %196, %276 : vector<16x128xf32>
    %c1_98 = arith.constant 1 : index
    %c0_99 = arith.constant 0 : index
    %c0_100 = arith.constant 0 : index
    %278 = vector.load %arg7[%c1_98, %c0_99, %c0_100] : memref<2x2x128xf32, #tpu.memory_space<vmem>>, vector<1x2x128xf32>
    %279 = vector.shape_cast %278 : vector<1x2x128xf32> to vector<2x128xf32>
    %280 = vector.extract_strided_slice %279 {offsets = [0, 0], sizes = [1, 128], strides = [1, 1]} : vector<2x128xf32> to vector<1x128xf32>
    %281 = vector.extract_strided_slice %279 {offsets = [1, 0], sizes = [1, 128], strides = [1, 1]} : vector<2x128xf32> to vector<1x128xf32>
    %cst_101 = arith.constant dense<0.000000e+00> : vector<16xf32>
    %282 = vector.multi_reduction <add>, %277, %cst_101 [1] : vector<16x128xf32> to vector<16xf32>
    %283 = vector.shape_cast %282 : vector<16xf32> to vector<16x1xf32>
    %cst_102 = arith.constant 3.125000e-02 : f32
    %284 = vector.broadcast %cst_102 : f32 to vector<16x1xf32>
    %285 = arith.mulf %283, %284 : vector<16x1xf32>
    %286 = arith.mulf %277, %277 : vector<16x128xf32>
    %cst_103 = arith.constant dense<0.000000e+00> : vector<16xf32>
    %287 = vector.multi_reduction <add>, %286, %cst_103 [1] : vector<16x128xf32> to vector<16xf32>
    %288 = vector.shape_cast %287 : vector<16xf32> to vector<16x1xf32>
    %cst_104 = arith.constant 3.125000e-02 : f32
    %289 = vector.broadcast %cst_104 : f32 to vector<16x1xf32>
    %290 = arith.mulf %288, %289 : vector<16x1xf32>
    %291 = arith.mulf %285, %285 : vector<16x1xf32>
    %292 = arith.subf %290, %291 : vector<16x1xf32>
    %cst_105 = arith.constant 0.000000e+00 : f32
    %293 = vector.broadcast %cst_105 : f32 to vector<16x1xf32>
    %294 = arith.maximumf %292, %293 : vector<16x1xf32>
    %295 = vector.broadcast %285 : vector<16x1xf32> to vector<16x128xf32>
    %296 = arith.subf %277, %295 : vector<16x128xf32>
    %cst_106 = arith.constant 9.99999996E-13 : f32
    %297 = vector.broadcast %cst_106 : f32 to vector<16x1xf32>
    %298 = arith.addf %294, %297 : vector<16x1xf32>
    %299 = math.rsqrt %298 : vector<16x1xf32>
    %300 = vector.broadcast %299 : vector<16x1xf32> to vector<16x128xf32>
    %301 = arith.mulf %296, %300 : vector<16x128xf32>
    %302 = vector.broadcast %280 : vector<1x128xf32> to vector<16x128xf32>
    %303 = arith.mulf %301, %302 : vector<16x128xf32>
    %304 = vector.broadcast %281 : vector<1x128xf32> to vector<16x128xf32>
    %305 = arith.addf %303, %304 : vector<16x128xf32>
    %c1_107 = arith.constant 1 : index
    %c0_108 = arith.constant 0 : index
    %c0_109 = arith.constant 0 : index
    %306 = vector.load %arg8[%c1_107, %c0_108, %c0_109] : memref<2x128x128xbf16, #tpu.memory_space<vmem>>, vector<1x128x128xbf16>
    %307 = vector.shape_cast %306 : vector<1x128x128xbf16> to vector<128x128xbf16>
    %308 = arith.truncf %305 : vector<16x128xf32> to vector<16x128xbf16>
    %cst_110 = arith.constant dense<0.000000e+00> : vector<16x128xf32>
    %309 = tpu.matmul %308, %307, %cst_110 {dimension_numbers = #tpu.dot_dimension_numbers<[1], [0], [0], [1], [0, 0, 1, 1], [], []>} : vector<16x128xbf16>, vector<128x128xbf16>, vector<16x128xf32> -> vector<16x128xf32>
    %c1_111 = arith.constant 1 : index
    %c0_112 = arith.constant 0 : index
    %c0_113 = arith.constant 0 : index
    %310 = vector.load %arg9[%c1_111, %c0_112, %c0_113] : memref<2x1x128xf32, #tpu.memory_space<vmem>>, vector<1x1x128xf32>
    %311 = vector.shape_cast %310 : vector<1x1x128xf32> to vector<1x128xf32>
    %312 = vector.broadcast %311 : vector<1x128xf32> to vector<16x128xf32>
    %313 = arith.addf %309, %312 : vector<16x128xf32>
    %cst_114 = arith.constant 5.000000e-01 : f32
    %314 = vector.broadcast %cst_114 : f32 to vector<16x128xf32>
    %315 = arith.mulf %314, %313 : vector<16x128xf32>
    %cst_115 = arith.constant 4.471500e-02 : f32
    %316 = vector.broadcast %cst_115 : f32 to vector<16x128xf32>
    %317 = arith.mulf %316, %313 : vector<16x128xf32>
    %318 = arith.mulf %317, %313 : vector<16x128xf32>
    %319 = arith.mulf %318, %313 : vector<16x128xf32>
    %320 = arith.addf %313, %319 : vector<16x128xf32>
    %cst_116 = arith.constant 0.797884583 : f32
    %321 = vector.broadcast %cst_116 : f32 to vector<16x128xf32>
    %322 = arith.mulf %321, %320 : vector<16x128xf32>
    %323 = math.tanh %322 : vector<16x128xf32>
    %cst_117 = arith.constant 1.000000e+00 : f32
    %324 = vector.broadcast %cst_117 : f32 to vector<16x128xf32>
    %325 = arith.addf %324, %323 : vector<16x128xf32>
    %326 = arith.mulf %315, %325 : vector<16x128xf32>
    %c1_118 = arith.constant 1 : index
    %c0_119 = arith.constant 0 : index
    %c0_120 = arith.constant 0 : index
    %327 = vector.load %arg10[%c1_118, %c0_119, %c0_120] : memref<2x128x128xbf16, #tpu.memory_space<vmem>>, vector<1x128x128xbf16>
    %328 = vector.shape_cast %327 : vector<1x128x128xbf16> to vector<128x128xbf16>
    %329 = arith.truncf %326 : vector<16x128xf32> to vector<16x128xbf16>
    %cst_121 = arith.constant dense<0.000000e+00> : vector<16x128xf32>
    %330 = tpu.matmul %329, %328, %cst_121 {dimension_numbers = #tpu.dot_dimension_numbers<[1], [0], [0], [1], [0, 0, 1, 1], [], []>} : vector<16x128xbf16>, vector<128x128xbf16>, vector<16x128xf32> -> vector<16x128xf32>
    %c1_122 = arith.constant 1 : index
    %c0_123 = arith.constant 0 : index
    %c0_124 = arith.constant 0 : index
    %331 = vector.load %arg11[%c1_122, %c0_123, %c0_124] : memref<2x1x128xf32, #tpu.memory_space<vmem>>, vector<1x1x128xf32>
    %332 = vector.shape_cast %331 : vector<1x1x128xf32> to vector<1x128xf32>
    %333 = vector.broadcast %332 : vector<1x128xf32> to vector<16x128xf32>
    %334 = arith.addf %330, %333 : vector<16x128xf32>
    %335 = arith.addf %305, %334 : vector<16x128xf32>
    %c1_125 = arith.constant 1 : index
    %c0_126 = arith.constant 0 : index
    %c0_127 = arith.constant 0 : index
    %336 = vector.load %arg12[%c1_125, %c0_126, %c0_127] : memref<2x2x128xf32, #tpu.memory_space<vmem>>, vector<1x2x128xf32>
    %337 = vector.shape_cast %336 : vector<1x2x128xf32> to vector<2x128xf32>
    %338 = vector.extract_strided_slice %337 {offsets = [0, 0], sizes = [1, 128], strides = [1, 1]} : vector<2x128xf32> to vector<1x128xf32>
    %339 = vector.extract_strided_slice %337 {offsets = [1, 0], sizes = [1, 128], strides = [1, 1]} : vector<2x128xf32> to vector<1x128xf32>
    %cst_128 = arith.constant dense<0.000000e+00> : vector<16xf32>
    %340 = vector.multi_reduction <add>, %335, %cst_128 [1] : vector<16x128xf32> to vector<16xf32>
    %341 = vector.shape_cast %340 : vector<16xf32> to vector<16x1xf32>
    %cst_129 = arith.constant 3.125000e-02 : f32
    %342 = vector.broadcast %cst_129 : f32 to vector<16x1xf32>
    %343 = arith.mulf %341, %342 : vector<16x1xf32>
    %344 = arith.mulf %335, %335 : vector<16x128xf32>
    %cst_130 = arith.constant dense<0.000000e+00> : vector<16xf32>
    %345 = vector.multi_reduction <add>, %344, %cst_130 [1] : vector<16x128xf32> to vector<16xf32>
    %346 = vector.shape_cast %345 : vector<16xf32> to vector<16x1xf32>
    %cst_131 = arith.constant 3.125000e-02 : f32
    %347 = vector.broadcast %cst_131 : f32 to vector<16x1xf32>
    %348 = arith.mulf %346, %347 : vector<16x1xf32>
    %349 = arith.mulf %343, %343 : vector<16x1xf32>
    %350 = arith.subf %348, %349 : vector<16x1xf32>
    %cst_132 = arith.constant 0.000000e+00 : f32
    %351 = vector.broadcast %cst_132 : f32 to vector<16x1xf32>
    %352 = arith.maximumf %350, %351 : vector<16x1xf32>
    %353 = vector.broadcast %343 : vector<16x1xf32> to vector<16x128xf32>
    %354 = arith.subf %335, %353 : vector<16x128xf32>
    %cst_133 = arith.constant 9.99999996E-13 : f32
    %355 = vector.broadcast %cst_133 : f32 to vector<16x1xf32>
    %356 = arith.addf %352, %355 : vector<16x1xf32>
    %357 = math.rsqrt %356 : vector<16x1xf32>
    %358 = vector.broadcast %357 : vector<16x1xf32> to vector<16x128xf32>
    %359 = arith.mulf %354, %358 : vector<16x128xf32>
    %360 = vector.broadcast %338 : vector<1x128xf32> to vector<16x128xf32>
    %361 = arith.mulf %359, %360 : vector<16x128xf32>
    %362 = vector.broadcast %339 : vector<1x128xf32> to vector<16x128xf32>
    %363 = arith.addf %361, %362 : vector<16x128xf32>
    %364 = vector.extract_strided_slice %363 {offsets = [0, 0], sizes = [1, 128], strides = [1, 1]} : vector<16x128xf32> to vector<1x128xf32>
    %365 = vector.extract_strided_slice %363 {offsets = [8, 0], sizes = [1, 128], strides = [1, 1]} : vector<16x128xf32> to vector<1x128xf32>
    %366 = tpu.concatenate %364, %365 in 0 : vector<1x128xf32>, vector<1x128xf32> -> vector<2x128xf32>
    %c0_134 = arith.constant 0 : index
    %c0_135 = arith.constant 0 : index
    %367 = vector.load %arg13[%c0_134, %c0_135] : memref<128x128xbf16, #tpu.memory_space<vmem>>, vector<128x128xbf16>
    %368 = arith.truncf %366 : vector<2x128xf32> to vector<2x128xbf16>
    %cst_136 = arith.constant dense<0.000000e+00> : vector<2x128xf32>
    %369 = tpu.matmul %368, %367, %cst_136 {dimension_numbers = #tpu.dot_dimension_numbers<[1], [0], [0], [1], [0, 0, 1, 1], [], []>} : vector<2x128xbf16>, vector<128x128xbf16>, vector<2x128xf32> -> vector<2x128xf32>
    %c0_137 = arith.constant 0 : index
    %c0_138 = arith.constant 0 : index
    %370 = vector.load %arg14[%c0_137, %c0_138] : memref<1x128xf32, #tpu.memory_space<vmem>>, vector<1x128xf32>
    %371 = vector.broadcast %370 : vector<1x128xf32> to vector<2x128xf32>
    %372 = arith.addf %369, %371 : vector<2x128xf32>
    %373 = math.tanh %372 : vector<2x128xf32>
    %c0_139 = arith.constant 0 : index
    %c0_140 = arith.constant 0 : index
    %374 = vector.load %arg15[%c0_139, %c0_140] : memref<128x128xbf16, #tpu.memory_space<vmem>>, vector<128x128xbf16>
    %375 = arith.truncf %373 : vector<2x128xf32> to vector<2x128xbf16>
    %cst_141 = arith.constant dense<0.000000e+00> : vector<2x128xf32>
    %376 = tpu.matmul %375, %374, %cst_141 {dimension_numbers = #tpu.dot_dimension_numbers<[1], [0], [0], [1], [0, 0, 1, 1], [], []>} : vector<2x128xbf16>, vector<128x128xbf16>, vector<2x128xf32> -> vector<2x128xf32>
    %c0_142 = arith.constant 0 : index
    %c0_143 = arith.constant 0 : index
    %377 = vector.load %arg16[%c0_142, %c0_143] : memref<1x128xf32, #tpu.memory_space<vmem>>, vector<1x128xf32>
    %378 = vector.broadcast %377 : vector<1x128xf32> to vector<2x128xf32>
    %379 = arith.addf %376, %378 : vector<2x128xf32>
    %cst_144 = arith.constant 0.000000e+00 : f32
    %380 = vector.broadcast %cst_144 : f32 to vector<2x128xf32>
    %381 = arith.subf %380, %379 : vector<2x128xf32>
    %382 = math.exp %381 : vector<2x128xf32>
    %cst_145 = arith.constant 1.000000e+00 : f32
    %383 = vector.broadcast %cst_145 : f32 to vector<2x128xf32>
    %384 = arith.addf %383, %382 : vector<2x128xf32>
    %cst_146 = arith.constant 1.000000e+00 : f32
    %385 = vector.broadcast %cst_146 : f32 to vector<2x128xf32>
    %386 = arith.divf %385, %384 : vector<2x128xf32>
    %c0_147 = arith.constant 0 : index
    %c0_148 = arith.constant 0 : index
    %387 = vector.load %arg17[%c0_147, %c0_148] : memref<2x128xf32, #tpu.memory_space<vmem>>, vector<2x128xf32>
    tpu.vector_store %arg17[%c0_147, %c0_148], %386 {strides = array<i32>} : memref<2x128xf32, #tpu.memory_space<vmem>>, vector<2x128xf32>,
    return
  }
}

</mosaic_0001>

<llo_original>
// kernel: tpu_custom_call.1
$region0: #{tpu_custom_call.1}
  #allocation0 [shape = 'u32[]', space=smem, size = 0x4, offset = 0x4, fixed_abs, tag = 'smem constant byte address 0x4 - core index']
  #allocation1 [shape = 'u32[144,128]{1,0:T(1,128)}', space=vmem, size = 0x12000, scoped, tag = 'internal scratch']
  %s0 = inlined_call_operand.hbm [shape: f32[16,128], index: 0, kind: input, shape index: {}]
  %s1 = inlined_call_operand.hbm [shape: f32[16,16], index: 1, kind: input, shape index: {}]
  %s2 = inlined_call_operand.hbm [shape: f32[2,128], index: 2, kind: input, shape index: {}]
  %s3 = inlined_call_operand.hbm [shape: bf16[2,128,384], index: 3, kind: input, shape index: {}]
  %s4 = inlined_call_operand.vmem [shape: f32[2,1,384], index: 4, kind: input, shape index: {}]
  %s5 = inlined_call_operand.hbm [shape: bf16[2,128,128], index: 5, kind: input, shape index: {}]
  %s6 = inlined_call_operand.hbm [shape: f32[2,1,128], index: 6, kind: input, shape index: {}]
  %s7 = inlined_call_operand.vmem [shape: f32[2,2,128], index: 7, kind: input, shape index: {}]
  %s8 = inlined_call_operand.hbm [shape: bf16[2,128,128], index: 8, kind: input, shape index: {}]
  %s9 = inlined_call_operand.vmem [shape: f32[2,1,128], index: 9, kind: input, shape index: {}]
  %s10 = inlined_call_operand.hbm [shape: bf16[2,128,128], index: 10, kind: input, shape index: {}]
  %s11 = inlined_call_operand.vmem [shape: f32[2,1,128], index: 11, kind: input, shape index: {}]
  %s12 = inlined_call_operand.vmem [shape: f32[2,2,128], index: 12, kind: input, shape index: {}]
  %s13 = inlined_call_operand.hbm [shape: bf16[128,128], index: 13, kind: input, shape index: {}]
  %s14 = inlined_call_operand.vmem [shape: f32[1,128], index: 14, kind: input, shape index: {}]
  %s15 = inlined_call_operand.hbm [shape: bf16[128,128], index: 15, kind: input, shape index: {}]
  %s16 = inlined_call_operand.vmem [shape: f32[1,128], index: 16, kind: input, shape index: {}]
  %s17 = inlined_call_operand.hbm [shape: f32[2,128], index: 17, kind: output, shape index: {}]
  %s18 = sld [smem:[#allocation0]]
  $region118: #{tpu_custom_call.1} parent=0
    _
  %s20 = ssub.s32 1, %s18
  %s21 = scalar_select 0, %s20, %s18
  $region1: #{tpu_custom_call.1} parent=0
    #allocation2 [shape = 'u8[8192]{0}', space=vmem, size = 0x2000, scoped, tag = 'input window, operand 0, single buffered']
    #allocation3 [shape = 's32[1]{0}', space=sflag, size = 0x4, scoped, tag = 'scoped memory for tpu_custom_call.1']
    #allocation4 [shape = 's32[1]{0}', space=sflag, size = 0x4, scoped, tag = 'scoped memory for tpu_custom_call.1']
    #allocation5 [shape = 'u8[8192]{0}', space=vmem, size = 0x2000, scoped, tag = 'input window, operand 1, single buffered']
    #allocation6 [shape = 's32[1]{0}', space=sflag, size = 0x4, scoped, tag = 'scoped memory for tpu_custom_call.1']
    #allocation7 [shape = 'u8[1024]{0}', space=vmem, size = 0x400, scoped, tag = 'input window, operand 2, single buffered']
    #allocation8 [shape = 'u8[196608]{0}', space=vmem, size = 0x30000, scoped, tag = 'input window, operand 3, single buffered']
    #allocation9 [shape = 's32[1]{0}', space=sflag, size = 0x4, scoped, tag = 'scoped memory for tpu_custom_call.1']
    #allocation10 [shape = 'u8[65536]{0}', space=vmem, size = 0x10000, scoped, tag = 'input window, operand 5, single buffered']
    #allocation11 [shape = 'u8[1024]{0}', space=vmem, size = 0x400, scoped, tag = 'input window, operand 6, single buffered']
    #allocation12 [shape = 's32[1]{0}', space=sflag, size = 0x4, scoped, tag = 'scoped memory for tpu_custom_call.1']
    #allocation13 [shape = 'u8[65536]{0}', space=vmem, size = 0x10000, scoped, tag = 'input window, operand 8, single buffered']
    #allocation14 [shape = 'u8[65536]{0}', space=vmem, size = 0x10000, scoped, tag = 'input window, operand 10, single buffered']
    #allocation15 [shape = 's32[1]{0}', space=sflag, size = 0x4, scoped, tag = 'scoped memory for tpu_custom_call.1']
    #allocation16 [shape = 'u8[32768]{0}', space=vmem, size = 0x8000, scoped, tag = 'input window, operand 13, single buffered']
    #allocation17 [shape = 'u8[32768]{0}', space=vmem, size = 0x8000, scoped, tag = 'input window, operand 15, single buffered']
    #allocation18 [shape = 's32[1]{0}', space=sflag, size = 0x4, scoped, tag = 'scoped memory for tpu_custom_call.1']
    #allocation19 [shape = 'u8[1024]{0}', space=vmem, size = 0x400, scoped, tag = 'output window, operand 0, single buffered']
    %22 = vsyncpa [#allocation3], 0
    %23 = vsyncpa [#allocation6], 0
    %24 = vsyncpa [#allocation9], 0
    %25 = vsyncpa [#allocation12], 0
    %26 = vsyncpa [#allocation15], 0
    %27 = vsyncpa [#allocation18], 0
    %28 = vsyncpa [#allocation4], 0
    // Predicated region
    $region2: #{tpu_custom_call.1} parent=1 // pred_check
      _
    $region3: #{tpu_custom_call.1} parent=1 // pred_check_branch
      %30 = sbr.rel (0) target = $region5
    $region4: #{tpu_custom_call.1} parent=1 // pred_region
      %s32 = ssub.s32 256, 256
      %33 = vsyncadd [#allocation3], %s32
      %s34 = sshll.u32 [#allocation2], 4
      %s35 = int_to_ptr.vmem [resolvable:$true] %s34
      %40 = dma.hbm_to_vmem [thread:$0]  %s0, 256, %s35, [#allocation3], 128, 128, 8
    $region5: #{tpu_custom_call.1} parent=1 // pred_fallthru
      _
    // Predicated region
    $region6: #{tpu_custom_call.1} parent=1 // pred_check
      _
    $region7: #{tpu_custom_call.1} parent=1 // pred_check_branch
      %42 = sbr.rel (0) target = $region9
    $region8: #{tpu_custom_call.1} parent=1 // pred_region
      %s44 = ssub.s32 256, 256
      %45 = vsyncadd [#allocation6], %s44
      %s46 = sshll.u32 [#allocation5], 4
      %s47 = int_to_ptr.vmem [resolvable:$true] %s46
      %52 = dma.hbm_to_vmem [thread:$0]  %s1, 256, %s47, [#allocation6], 128, 128, 8
    $region9: #{tpu_custom_call.1} parent=1 // pred_fallthru
      _
    // Predicated region
    $region10: #{tpu_custom_call.1} parent=1 // pred_check
      _
    $region11: #{tpu_custom_call.1} parent=1 // pred_check_branch
      %54 = sbr.rel (0) target = $region13
    $region12: #{tpu_custom_call.1} parent=1 // pred_region
      %s56 = ssub.s32 32, 32
      %57 = vsyncadd [#allocation6], %s56
      %s59 = sshll.u32 [#allocation7], 4
      %s60 = int_to_ptr.vmem [resolvable:$true] %s59
      %62 = dma.hbm_to_vmem [thread:$0]  %s2, 32, %s60, [#allocation6]
    $region13: #{tpu_custom_call.1} parent=1 // pred_fallthru
      _
    // Predicated region
    $region14: #{tpu_custom_call.1} parent=1 // pred_check
      _
    $region15: #{tpu_custom_call.1} parent=1 // pred_check_branch
      %64 = sbr.rel (0) target = $region17
    $region16: #{tpu_custom_call.1} parent=1 // pred_region
      %s66 = ssub.s32 6144, 6144
      %67 = vsyncadd [#allocation9], %s66
      %s68 = sshll.u32 [#allocation8], 4
      %s69 = int_to_ptr.vmem [resolvable:$true] %s68
      %74 = dma.hbm_to_vmem [thread:$0]  %s3, 6144, %s69, [#allocation9], 192, 192, 12
    $region17: #{tpu_custom_call.1} parent=1 // pred_fallthru
      _
    // Predicated region
    $region18: #{tpu_custom_call.1} parent=1 // pred_check
      _
    $region19: #{tpu_custom_call.1} parent=1 // pred_check_branch
      %76 = sbr.rel (0) target = $region21
    $region20: #{tpu_custom_call.1} parent=1 // pred_region
      _
    $region21: #{tpu_custom_call.1} parent=1 // pred_fallthru
      _
    // Predicated region
    $region22: #{tpu_custom_call.1} parent=1 // pred_check
      _
    $region23: #{tpu_custom_call.1} parent=1 // pred_check_branch
      %78 = sbr.rel (0) target = $region25
    $region24: #{tpu_custom_call.1} parent=1 // pred_region
      %s80 = ssub.s32 2048, 2048
      %81 = vsyncadd [#allocation9], %s80
      %s82 = sshll.u32 [#allocation10], 4
      %s83 = int_to_ptr.vmem [resolvable:$true] %s82
      %88 = dma.hbm_to_vmem [thread:$0]  %s5, 2048, %s83, [#allocation9], 64, 64, 4
    $region25: #{tpu_custom_call.1} parent=1 // pred_fallthru
      _
    // Predicated region
    $region26: #{tpu_custom_call.1} parent=1 // pred_check
      _
    $region27: #{tpu_custom_call.1} parent=1 // pred_check_branch
      %90 = sbr.rel (0) target = $region29
    $region28: #{tpu_custom_call.1} parent=1 // pred_region
      %s92 = ssub.s32 32, 32
      %93 = vsyncadd [#allocation12], %s92
      %s94 = sshll.u32 [#allocation11], 4
      %s95 = int_to_ptr.vmem [resolvable:$true] %s94
      %100 = dma.hbm_to_vmem [thread:$0]  %s6, 32, %s95, [#allocation12], 16, 16, 1
    $region29: #{tpu_custom_call.1} parent=1 // pred_fallthru
      _
    // Predicated region
    $region30: #{tpu_custom_call.1} parent=1 // pred_check
      _
    $region31: #{tpu_custom_call.1} parent=1 // pred_check_branch
      %102 = sbr.rel (0) target = $region33
    $region32: #{tpu_custom_call.1} parent=1 // pred_region
      _
    $region33: #{tpu_custom_call.1} parent=1 // pred_fallthru
      _
    // Predicated region
    $region34: #{tpu_custom_call.1} parent=1 // pred_check
      _
    $region35: #{tpu_custom_call.1} parent=1 // pred_check_branch
      %104 = sbr.rel (0) target = $region37
    $region36: #{tpu_custom_call.1} parent=1 // pred_region
      %s106 = ssub.s32 2048, 2048
      %107 = vsyncadd [#allocation12], %s106
      %s108 = sshll.u32 [#allocation13], 4
      %s109 = int_to_ptr.vmem [resolvable:$true] %s108
      %114 = dma.hbm_to_vmem [thread:$0]  %s8, 2048, %s109, [#allocation12], 64, 64, 4
    $region37: #{tpu_custom_call.1} parent=1 // pred_fallthru
      _
    // Predicated region
    $region38: #{tpu_custom_call.1} parent=1 // pred_check
      _
    $region39: #{tpu_custom_call.1} parent=1 // pred_check_branch
      %116 = sbr.rel (0) target = $region41
    $region40: #{tpu_custom_call.1} parent=1 // pred_region
      _
    $region41: #{tpu_custom_call.1} parent=1 // pred_fallthru
      _
    // Predicated region
    $region42: #{tpu_custom_call.1} parent=1 // pred_check
      _
    $region43: #{tpu_custom_call.1} parent=1 // pred_check_branch
      %118 = sbr.rel (0) target = $region45
    $region44: #{tpu_custom_call.1} parent=1 // pred_region
      %s120 = ssub.s32 2048, 2048
      %121 = vsyncadd [#allocation15], %s120
      %s122 = sshll.u32 [#allocation14], 4
      %s123 = int_to_ptr.vmem [resolvable:$true] %s122
      %128 = dma.hbm_to_vmem [thread:$0]  %s10, 2048, %s123, [#allocation15], 64, 64, 4
    $region45: #{tpu_custom_call.1} parent=1 // pred_fallthru
      _
    // Predicated region
    $region46: #{tpu_custom_call.1} parent=1 // pred_check
      _
    $region47: #{tpu_custom_call.1} parent=1 // pred_check_branch
      %130 = sbr.rel (0) target = $region49
    $region48: #{tpu_custom_call.1} parent=1 // pred_region
      _
    $region49: #{tpu_custom_call.1} parent=1 // pred_fallthru
      _
    // Predicated region
    $region50: #{tpu_custom_call.1} parent=1 // pred_check
      _
    $region51: #{tpu_custom_call.1} parent=1 // pred_check_branch
      %132 = sbr.rel (0) target = $region53
    $region52: #{tpu_custom_call.1} parent=1 // pred_region
      _
    $region53: #{tpu_custom_call.1} parent=1 // pred_fallthru
      _
    // Predicated region
    $region54: #{tpu_custom_call.1} parent=1 // pred_check
      _
    $region55: #{tpu_custom_call.1} parent=1 // pred_check_branch
      %134 = sbr.rel (0) target = $region57
    $region56: #{tpu_custom_call.1} parent=1 // pred_region
      %s136 = ssub.s32 1024, 1024
      %137 = vsyncadd [#allocation15], %s136
      %s138 = sshll.u32 [#allocation16], 4
      %s139 = int_to_ptr.vmem [resolvable:$true] %s138
      %144 = dma.hbm_to_vmem [thread:$0]  %s13, 1024, %s139, [#allocation15], 64, 64, 4
    $region57: #{tpu_custom_call.1} parent=1 // pred_fallthru
      _
    // Predicated region
    $region58: #{tpu_custom_call.1} parent=1 // pred_check
      _
    $region59: #{tpu_custom_call.1} parent=1 // pred_check_branch
      %146 = sbr.rel (0) target = $region61
    $region60: #{tpu_custom_call.1} parent=1 // pred_region
      _
    $region61: #{tpu_custom_call.1} parent=1 // pred_fallthru
      _
    // Predicated region
    $region62: #{tpu_custom_call.1} parent=1 // pred_check
      _
    $region63: #{tpu_custom_call.1} parent=1 // pred_check_branch
      %148 = sbr.rel (0) target = $region65
    $region64: #{tpu_custom_call.1} parent=1 // pred_region
      %s150 = ssub.s32 1024, 1024
      %151 = vsyncadd [#allocation18], %s150
      %s152 = sshll.u32 [#allocation17], 4
      %s153 = int_to_ptr.vmem [resolvable:$true] %s152
      %158 = dma.hbm_to_vmem [thread:$0]  %s15, 1024, %s153, [#allocation18], 64, 64, 4
    $region65: #{tpu_custom_call.1} parent=1 // pred_fallthru
      _
    // Predicated region
    $region66: #{tpu_custom_call.1} parent=1 // pred_check
      _
    $region67: #{tpu_custom_call.1} parent=1 // pred_check_branch
      %160 = sbr.rel (0) target = $region69
    $region68: #{tpu_custom_call.1} parent=1 // pred_region
      _
    $region69: #{tpu_custom_call.1} parent=1 // pred_fallthru
      _
    // Predicated region
    $region70: #{tpu_custom_call.1} parent=1 // pred_check
      _
    $region71: #{tpu_custom_call.1} parent=1 // pred_check_branch
      %162 = sbr.rel (0) target = $region73
    $region72: #{tpu_custom_call.1} parent=1 // pred_region
      %163 = dma.done [#allocation3], 256
    $region73: #{tpu_custom_call.1} parent=1 // pred_fallthru
      _
    // Predicated region
    $region74: #{tpu_custom_call.1} parent=1 // pred_check
      _
    $region75: #{tpu_custom_call.1} parent=1 // pred_check_branch
      %165 = sbr.rel (0) target = $region77
    $region76: #{tpu_custom_call.1} parent=1 // pred_region
      %166 = dma.done [#allocation6], 256
    $region77: #{tpu_custom_call.1} parent=1 // pred_fallthru
      _
    // Predicated region
    $region78: #{tpu_custom_call.1} parent=1 // pred_check
      _
    $region79: #{tpu_custom_call.1} parent=1 // pred_check_branch
      %168 = sbr.rel (0) target = $region81
    $region80: #{tpu_custom_call.1} parent=1 // pred_region
      %169 = dma.done [#allocation6], 32
    $region81: #{tpu_custom_call.1} parent=1 // pred_fallthru
      _
    // Predicated region
    $region82: #{tpu_custom_call.1} parent=1 // pred_check
      _
    $region83: #{tpu_custom_call.1} parent=1 // pred_check_branch
      %171 = sbr.rel (0) target = $region85
    $region84: #{tpu_custom_call.1} parent=1 // pred_region
      %172 = dma.done [#allocation9], 6144
    $region85: #{tpu_custom_call.1} parent=1 // pred_fallthru
      _
    // Predicated region
    $region86: #{tpu_custom_call.1} parent=1 // pred_check
      _
    $region87: #{tpu_custom_call.1} parent=1 // pred_check_branch
      %174 = sbr.rel (0) target = $region89
    $region88: #{tpu_custom_call.1} parent=1 // pred_region
      %175 = dma.done [#allocation9], 2048
    $region89: #{tpu_custom_call.1} parent=1 // pred_fallthru
      _
    // Predicated region
    $region90: #{tpu_custom_call.1} parent=1 // pred_check
      _
    $region91: #{tpu_custom_call.1} parent=1 // pred_check_branch
      %177 = sbr.rel (0) target = $region93
    $region92: #{tpu_custom_call.1} parent=1 // pred_region
      %178 = dma.done [#allocation12], 32
    $region93: #{tpu_custom_call.1} parent=1 // pred_fallthru
      _
    // Predicated region
    $region94: #{tpu_custom_call.1} parent=1 // pred_check
      _
    $region95: #{tpu_custom_call.1} parent=1 // pred_check_branch
      %180 = sbr.rel (0) target = $region97
    $region96: #{tpu_custom_call.1} parent=1 // pred_region
      %181 = dma.done [#allocation12], 2048
    $region97: #{tpu_custom_call.1} parent=1 // pred_fallthru
      _
    // Predicated region
    $region98: #{tpu_custom_call.1} parent=1 // pred_check
      _
    $region99: #{tpu_custom_call.1} parent=1 // pred_check_branch
      %183 = sbr.rel (0) target = $region101
    $region100: #{tpu_custom_call.1} parent=1 // pred_region
      %184 = dma.done [#allocation15], 2048
    $region101: #{tpu_custom_call.1} parent=1 // pred_fallthru
      _
    // Predicated region
    $region102: #{tpu_custom_call.1} parent=1 // pred_check
      _
    $region103: #{tpu_custom_call.1} parent=1 // pred_check_branch
      %186 = sbr.rel (0) target = $region105
    $region104: #{tpu_custom_call.1} parent=1 // pred_region
      %187 = dma.done [#allocation15], 1024
    $region105: #{tpu_custom_call.1} parent=1 // pred_fallthru
      _
    // Predicated region
    $region106: #{tpu_custom_call.1} parent=1 // pred_check
      _
    $region107: #{tpu_custom_call.1} parent=1 // pred_check_branch
      %189 = sbr.rel (0) target = $region109
    $region108: #{tpu_custom_call.1} parent=1 // pred_region
      %190 = dma.done [#allocation18], 1024
    $region109: #{tpu_custom_call.1} parent=1 // pred_fallthru
      _
    %v192 = vld [vmem:[#allocation2] sm:$0xff]
    %v193 = vld [vmem:[#allocation2 + $0x8] sm:$0xff]
    %v194 = vld [vmem:[#allocation7] sm:$0x3]
    %195 = vadd.xlane.f32.xlu0 %v192
    %v196 = vpop.xlane.xlu0 %195
    %197 = vadd.xlane.f32.xlu0 %v193
    %v198 = vpop.xlane.xlu0 %197
    %v199 = vmul.f32 %v196, 0.03125
    %v200 = vmul.f32 %v198, 0.03125
    %v201 = vmul.f32 %v192, %v192
    %v202 = vmul.f32 %v193, %v193
    %203 = vadd.xlane.f32.xlu0 %v201
    %v204 = vpop.xlane.xlu0 %203
    %205 = vadd.xlane.f32.xlu0 %v202
    %v206 = vpop.xlane.xlu0 %205
    %v207 = vmul.f32 %v204, 0.03125
    %v208 = vmul.f32 %v206, 0.03125
    %v209 = vmul.f32 %v199, %v199
    %v210 = vmul.f32 %v200, %v200
    %v211 = vsub.f32 %v207, %v209
    %v212 = vsub.f32 %v208, %v210
    %v213 = vmax.f32 %v211, 0.0
    %v214 = vmax.f32 %v212, 0.0
    %v215 = vsub.f32 %v192, %v199
    %v216 = vsub.f32 %v193, %v200
    %v217 = vadd.f32 %v213, 1e-12
    %v218 = vadd.f32 %v214, 1e-12
    %v219 = vrsqrt.pop %v217
    %v220 = vrsqrt.pop %v218
    %v221 = vmul.f32 %v215, %v219
    %v222 = vmul.f32 %v216, %v220
    %v223 = vlaneseq
    %v224 = vshrl.u32 %v223, 7
    %v225 = vsub.s32 0, %v224
    %v226 = vrot.slane %v194, %v225
    %v227 = vmul.f32 %v221, %v226
    %v228 = vmul.f32 %v222, %v226
    %v229 = vlaneseq
    %v230 = vshrl.u32 %v229, 7
    %v231 = vsub.s32 1, %v230
    %v232 = vrot.slane %v194, %v231
    %v233 = vadd.f32 %v227, %v232
    %v234 = vadd.f32 %v228, %v232
    %v235 = vld [vmem:[#allocation5] sm:$0xff]
    %v236 = vld [vmem:[#allocation5 + $0x8] sm:$0xff]
    %v237 = vlaneseq
    %v238 = vand.u32 %v237, 127
    %v239 = vld [vmem:[#allocation8] sm:$0xff]
    %v240 = vld [vmem:[#allocation8 + $0x8] sm:$0xf]
    %v241 = vld [vmem:[#allocation8 + $0xc] sm:$0xff]
    %v242 = vld [vmem:[#allocation8 + $0x14] sm:$0xf]
    %v243 = vld [vmem:[#allocation8 + $0x18] sm:$0xff]
    %v244 = vld [vmem:[#allocation8 + $0x20] sm:$0xf]
    %v245 = vld [vmem:[#allocation8 + $0x24] sm:$0xff]
    %v246 = vld [vmem:[#allocation8 + $0x2c] sm:$0xf]
    %v247 = vld [vmem:[#allocation8 + $0x30] sm:$0xff]
    %v248 = vld [vmem:[#allocation8 + $0x38] sm:$0xf]
    %v249 = vld [vmem:[#allocation8 + $0x3c] sm:$0xff]
    %v250 = vld [vmem:[#allocation8 + $0x44] sm:$0xf]
    %v251 = vld [vmem:[#allocation8 + $0x48] sm:$0xff]
    %v252 = vld [vmem:[#allocation8 + $0x50] sm:$0xf]
    %v253 = vld [vmem:[#allocation8 + $0x54] sm:$0xff]
    %v254 = vld [vmem:[#allocation8 + $0x5c] sm:$0xf]
    %v255 = vld [vmem:[#allocation8 + $0x60] sm:$0xff]
    %v256 = vld [vmem:[#allocation8 + $0x68] sm:$0xf]
    %v257 = vld [vmem:[#allocation8 + $0x6c] sm:$0xff]
    %v258 = vld [vmem:[#allocation8 + $0x74] sm:$0xf]
    %v259 = vld [vmem:[#allocation8 + $0x78] sm:$0xff]
    %v260 = vld [vmem:[#allocation8 + $0x80] sm:$0xf]
    %v261 = vld [vmem:[#allocation8 + $0x84] sm:$0xff]
    %v262 = vld [vmem:[#allocation8 + $0x8c] sm:$0xf]
    %v263 = vld [vmem:[#allocation8 + $0x90] sm:$0xff]
    %v264 = vld [vmem:[#allocation8 + $0x98] sm:$0xf]
    %v265 = vld [vmem:[#allocation8 + $0x9c] sm:$0xff]
    %v266 = vld [vmem:[#allocation8 + $0xa4] sm:$0xf]
    %v267 = vld [vmem:[#allocation8 + $0xa8] sm:$0xff]
    %v268 = vld [vmem:[#allocation8 + $0xb0] sm:$0xf]
    %v269 = vld [vmem:[#allocation8 + $0xb4] sm:$0xff]
    %v270 = vld [vmem:[#allocation8 + $0xbc] sm:$0xf]
    %v271 = vpack.c.bf16 %v234, %v233
    %v272 = vld [vmem:[%s4] sm:$0x7]
    %v274 = vlaneseq
    %v275 = vshrl.u32 %v274, 7
    %v276 = vsub.s32 0, %v275
    %v277 = vrot.slane %v272, %v276
    %v278 = vlaneseq
    %v279 = vshrl.u32 %v278, 7
    %v280 = vsub.s32 1, %v279
    %v281 = vrot.slane %v272, %v280
    %v282 = vlaneseq
    %v283 = vshrl.u32 %v282, 7
    %v284 = vsub.s32 2, %v283
    %v285 = vrot.slane %v272, %v284
    %v321 = vunpack.c.l.b16 %v239
    %v322 = vunpack.c.h.b16 %v239
    %v323 = vunpack.c.l.b16 %v240
    %v324 = vunpack.c.l.b16 %v241
    %v325 = vunpack.c.h.b16 %v241
    %v326 = vunpack.c.l.b16 %v242
    %v327 = vunpack.c.l.b16 %v243
    %v328 = vunpack.c.h.b16 %v243
    %v329 = vunpack.c.l.b16 %v244
    %v330 = vunpack.c.l.b16 %v245
    %v331 = vunpack.c.h.b16 %v245
    %v332 = vunpack.c.l.b16 %v246
    %v333 = vunpack.c.l.b16 %v247
    %v334 = vunpack.c.h.b16 %v247
    %v335 = vunpack.c.l.b16 %v248
    %v336 = vunpack.c.l.b16 %v249
    %v337 = vunpack.c.h.b16 %v249
    %v338 = vunpack.c.l.b16 %v250
    %v339 = vunpack.c.l.b16 %v251
    %v340 = vunpack.c.h.b16 %v251
    %v341 = vunpack.c.l.b16 %v252
    %v342 = vunpack.c.l.b16 %v253
    %v343 = vunpack.c.h.b16 %v253
    %v344 = vunpack.c.l.b16 %v254
    %v345 = vunpack.c.l.b16 %v255
    %v346 = vunpack.c.h.b16 %v255
    %v347 = vunpack.c.l.b16 %v256
    %v348 = vunpack.c.l.b16 %v257
    %v349 = vunpack.c.h.b16 %v257
    %v350 = vunpack.c.l.b16 %v258
    %v351 = vunpack.c.l.b16 %v259
    %v352 = vunpack.c.h.b16 %v259
    %v353 = vunpack.c.l.b16 %v260
    %v354 = vunpack.c.l.b16 %v261
    %v355 = vunpack.c.h.b16 %v261
    %v356 = vunpack.c.l.b16 %v262
    %v357 = vunpack.c.l.b16 %v263
    %v358 = vunpack.c.h.b16 %v263
    %v359 = vunpack.c.l.b16 %v264
    %v360 = vunpack.c.l.b16 %v265
    %v361 = vunpack.c.h.b16 %v265
    %v362 = vunpack.c.l.b16 %v266
    %v363 = vunpack.c.l.b16 %v267
    %v364 = vunpack.c.h.b16 %v267
    %v365 = vunpack.c.l.b16 %v268
    %v366 = vunpack.c.l.b16 %v269
    %v367 = vunpack.c.h.b16 %v269
    %v368 = vunpack.c.l.b16 %v270
    %v369 = vpack.c.b16 %v324, %v321
    %v370 = vpack.c.b16 %v325, %v322
    %v371 = vpack.c.b16 %v326, %v323
    %v372 = vpack.c.b16 %v330, %v327
    %v373 = vpack.c.b16 %v331, %v328
    %v374 = vpack.c.b16 %v332, %v329
    %v375 = vpack.c.b16 %v336, %v333
    %v376 = vpack.c.b16 %v337, %v334
    %v377 = vpack.c.b16 %v338, %v335
    %v378 = vpack.c.b16 %v342, %v339
    %v379 = vpack.c.b16 %v343, %v340
    %v380 = vpack.c.b16 %v344, %v341
    %v381 = vpack.c.b16 %v348, %v345
    %v382 = vpack.c.b16 %v349, %v346
    %v383 = vpack.c.b16 %v350, %v347
    %v384 = vpack.c.b16 %v354, %v351
    %v385 = vpack.c.b16 %v355, %v352
    %v386 = vpack.c.b16 %v356, %v353
    %v387 = vpack.c.b16 %v360, %v357
    %v388 = vpack.c.b16 %v361, %v358
    %v389 = vpack.c.b16 %v362, %v359
    %v390 = vpack.c.b16 %v366, %v363
    %v391 = vpack.c.b16 %v367, %v364
    %v392 = vpack.c.b16 %v368, %v365
    %417 = vmatprep.subr.bf16.mxu0 %v391
    %418 = vmatpush1.bf16.msra.mxu0 %v390
    %419 = vmatprep.subr.bf16.mxu0 %v388
    %420 = vmatpush1.bf16.msra.mxu0 %v387
    %421 = vmatprep.subr.bf16.mxu0 %v385
    %422 = vmatpush1.bf16.msra.mxu0 %v384
    %423 = vmatprep.subr.bf16.mxu0 %v382
    %424 = vmatpush1.bf16.msra.mxu0 %v381
    %425 = vmatprep.subr.bf16.mxu0 %v379
    %426 = vmatpush1.bf16.msra.mxu0 %v378
    %427 = vmatprep.subr.bf16.mxu0 %v376
    %428 = vmatpush1.bf16.msra.mxu0 %v375
    %429 = vmatprep.subr.bf16.mxu0 %v373
    %430 = vmatpush1.bf16.msra.mxu0 %v372
    %431 = vmatprep.subr.bf16.mxu0 %v370
    %432 = vmatpush1.bf16.msra.mxu0 %v369
    %433 = vmatprep.subr.bf16.mxu0 0
    %434 = vmatpush2.bf16.msra.mxu0 0
    %435 = vmatprep.subr.bf16.mxu0 0
    %436 = vmatpush2.bf16.msra.mxu0 0
    %437 = vmatprep.subr.bf16.mxu0 0
    %438 = vmatpush2.bf16.msra.mxu0 0
    %439 = vmatprep.subr.bf16.mxu0 0
    %440 = vmatpush2.bf16.msra.mxu0 0
    %441 = vmatprep.subr.bf16.mxu0 0
    %442 = vmatpush2.bf16.msra.mxu0 0
    %443 = vmatprep.subr.bf16.mxu0 0
    %444 = vmatpush2.bf16.msra.mxu0 0
    %445 = vmatprep.subr.bf16.mxu0 0
    %446 = vmatpush2.bf16.msra.mxu0 0
    %447 = vmatprep.subr.bf16.mxu0 0
    %448 = vmatpush2.bf16.msra.mxu0 0
    %449 = vmatprep.mubr.bf16.mxu0 0
    %450 = vmatmul.mubr.bf16.gmra.mxu0 %v271
    %v451 = vpop.f32.mrf.mxu0
    %v452 = vadd.f32 %v277, %v451
    %v453 = vpop.f32.mrf.mxu0
    %v454 = vadd.f32 %v281, %v453
    %v455 = vpop.f32.mrf.mxu0
    %v456 = vadd.f32 %v277, %v455
    %v457 = vpop.f32.mrf.mxu0
    %v458 = vadd.f32 %v281, %v457
    %459 = vdwg.mxu0
    %460 = vmatprep.subr.bf16.mxu0 0
    %461 = vmatpush1.bf16.msra.mxu0 %v392
    %462 = vmatprep.subr.bf16.mxu0 0
    %463 = vmatpush1.bf16.msra.mxu0 %v389
    %464 = vmatprep.subr.bf16.mxu0 0
    %465 = vmatpush1.bf16.msra.mxu0 %v386
    %466 = vmatprep.subr.bf16.mxu0 0
    %467 = vmatpush1.bf16.msra.mxu0 %v383
    %468 = vmatprep.subr.bf16.mxu0 0
    %469 = vmatpush1.bf16.msra.mxu0 %v380
    %470 = vmatprep.subr.bf16.mxu0 0
    %471 = vmatpush1.bf16.msra.mxu0 %v377
    %472 = vmatprep.subr.bf16.mxu0 0
    %473 = vmatpush1.bf16.msra.mxu0 %v374
    %474 = vmatprep.subr.bf16.mxu0 0
    %475 = vmatpush1.bf16.msra.mxu0 %v371
    %476 = vmatprep.subr.bf16.mxu0 0
    %477 = vmatpush2.bf16.msra.mxu0 0
    %478 = vmatprep.subr.bf16.mxu0 0
    %479 = vmatpush2.bf16.msra.mxu0 0
    %480 = vmatprep.subr.bf16.mxu0 0
    %481 = vmatpush2.bf16.msra.mxu0 0
    %482 = vmatprep.subr.bf16.mxu0 0
    %483 = vmatpush2.bf16.msra.mxu0 0
    %484 = vmatprep.subr.bf16.mxu0 0
    %485 = vmatpush2.bf16.msra.mxu0 0
    %486 = vmatprep.subr.bf16.mxu0 0
    %487 = vmatpush2.bf16.msra.mxu0 0
    %488 = vmatprep.subr.bf16.mxu0 0
    %489 = vmatpush2.bf16.msra.mxu0 0
    %490 = vmatprep.subr.bf16.mxu0 0
    %491 = vmatpush2.bf16.msra.mxu0 0
    %492 = vmatprep.mubr.bf16.mxu0 0
    %493 = vmatmul.mubr.bf16.gmra.mxu0 %v271
    %v494 = vpop.f32.mrf.mxu0
    %v495 = vadd.f32 %v285, %v494
    %v496 = vpop.f32.mrf.mxu0
    %v497 = vpop.f32.mrf.mxu0
    %v498 = vadd.f32 %v285, %v497
    %v499 = vpop.f32.mrf.mxu0
    %500 = vdwg.mxu0
    %v501 = vmul.f32 %v452, 0.25
    %v502 = vmul.f32 %v456, 0.25
    %vm503 = vcmp.ge.s32.totalorder %v238, 0
    %vm504 = vcmp.lt.s32.totalorder %v238, 16
    %vm505 = vmand %vm503, %vm504
    %v506 = vsel %vm505, 1, 0
    %v507 = vcvt.s32.f32 %v506
    %v508 = vmul.f32 %v501, %v507
    %v509 = vmul.f32 %v502, %v507
    %v510 = vpack.c.bf16 %v509, %v508
    %v511 = vpack.c.bf16 %v458, %v454
    %512 = vmatprep.subr.bf16.mxu0 0
    %513 = vmatpush1.bf16.xpose.msra.mxu0 0
    %514 = vmatprep.subr.bf16.mxu0 0
    %515 = vmatpush1.bf16.xpose.msra.mxu0 0
    %516 = vmatprep.subr.bf16.mxu0 0
    %517 = vmatpush1.bf16.xpose.msra.mxu0 0
    %518 = vmatprep.subr.bf16.mxu0 0
    %519 = vmatpush1.bf16.xpose.msra.mxu0 0
    %520 = vmatprep.subr.bf16.mxu0 0
    %521 = vmatpush1.bf16.xpose.msra.mxu0 0
    %522 = vmatprep.subr.bf16.mxu0 0
    %523 = vmatpush1.bf16.xpose.msra.mxu0 0
    %524 = vmatprep.subr.bf16.mxu0 0
    %525 = vmatpush1.bf16.xpose.msra.mxu0 0
    %526 = vmatprep.subr.bf16.mxu0 0
    %527 = vmatpush1.bf16.xpose.msra.mxu0 %v511
    %528 = vmatprep.subr.bf16.mxu0 0
    %529 = vmatpush2.bf16.xpose.msra.mxu0 0
    %530 = vmatprep.subr.bf16.mxu0 0
    %531 = vmatpush2.bf16.xpose.msra.mxu0 0
    %532 = vmatprep.subr.bf16.mxu0 0
    %533 = vmatpush2.bf16.xpose.msra.mxu0 0
    %534 = vmatprep.subr.bf16.mxu0 0
    %535 = vmatpush2.bf16.xpose.msra.mxu0 0
    %536 = vmatprep.subr.bf16.mxu0 0
    %537 = vmatpush2.bf16.xpose.msra.mxu0 0
    %538 = vmatprep.subr.bf16.mxu0 0
    %539 = vmatpush2.bf16.xpose.msra.mxu0 0
    %540 = vmatprep.subr.bf16.mxu0 0
    %541 = vmatpush2.bf16.xpose.msra.mxu0 0
    %542 = vmatprep.subr.bf16.mxu0 0
    %543 = vmatpush2.bf16.xpose.msra.mxu0 0
    %544 = vmatprep.mubr.bf16.mxu0 0
    %545 = vmatmul.mubr.bf16.gmra.mxu0 %v510
    %v546 = vpop.f32.mrf.mxu0
    %v547 = vadd.f32 %v235, %v546
    %v548 = vpop.f32.mrf.mxu0
    %v549 = vpop.f32.mrf.mxu0
    %v550 = vadd.f32 %v236, %v549
    %v551 = vpop.f32.mrf.mxu0
    %552 = vdwg.mxu0
    %vm553 = vcmask 130048
    %v554 = vsel %vm553, %v547, -inf
    %555 = vmax.xlane.f32.xlu0 %v554
    %v556 = vpop.xlane.xlu0 %555
    %v557 = vsel %vm553, %v550, -inf
    %558 = vmax.xlane.f32.xlu0 %v557
    %v559 = vpop.xlane.xlu0 %558
    %v560 = vsub.f32 %v547, %v556
    %v561 = vsub.f32 %v550, %v559
    %v562 = vmul.f32 %v560, 1.442695
    %v563 = vpow.pop %v562
    %v564 = vmul.f32 %v561, 1.442695
    %v565 = vpow.pop %v564
    %v566 = vsel %vm553, %v563, 0.0
    %567 = vadd.xlane.f32.xlu0 %v566
    %v568 = vpop.xlane.xlu0 %567
    %v569 = vsel %vm553, %v565, 0.0
    %570 = vadd.xlane.f32.xlu0 %v569
    %v571 = vpop.xlane.xlu0 %570
    %v572 = vrcp.pop %v568
    %v573 = vrcp.pop %v571
    %v574 = vmul.f32 %v563, %v572
    %v575 = vmul.f32 %v565, %v573
    %v576 = vmul.f32 %v495, %v507
    %v577 = vmul.f32 %v498, %v507
    %v578 = vpack.c.bf16 %v575, %v574
    %v579 = vpack.c.bf16 %v577, %v576
    %vm580 = vcmp.ge.s32.totalorder %v238, 16
    %vm581 = vcmp.lt.s32.totalorder %v238, 32
    %vm582 = vmand %vm580, %vm581
    %v583 = vsel %vm582, 1, 0
    %v584 = vcvt.s32.f32 %v583
    %v585 = vmul.f32 %v501, %v584
    %v586 = vmul.f32 %v502, %v584
    %v587 = vpack.c.bf16 %v586, %v585
    %588 = vmatprep.subr.bf16.mxu0 0
    %589 = vmatpush1.bf16.xpose.msra.mxu0 0
    %590 = vmatprep.subr.bf16.mxu0 0
    %591 = vmatpush1.bf16.xpose.msra.mxu0 0
    %592 = vmatprep.subr.bf16.mxu0 0
    %593 = vmatpush1.bf16.xpose.msra.mxu0 0
    %594 = vmatprep.subr.bf16.mxu0 0
    %595 = vmatpush1.bf16.xpose.msra.mxu0 0
    %596 = vmatprep.subr.bf16.mxu0 0
    %597 = vmatpush1.bf16.xpose.msra.mxu0 0
    %598 = vmatprep.subr.bf16.mxu0 0
    %599 = vmatpush1.bf16.xpose.msra.mxu0 0
    %600 = vmatprep.subr.bf16.mxu0 0
    %601 = vmatpush1.bf16.xpose.msra.mxu0 0
    %602 = vmatprep.subr.bf16.mxu0 0
    %603 = vmatpush1.bf16.xpose.msra.mxu0 %v511
    %604 = vmatprep.subr.bf16.mxu0 0
    %605 = vmatpush2.bf16.xpose.msra.mxu0 0
    %606 = vmatprep.subr.bf16.mxu0 0
    %607 = vmatpush2.bf16.xpose.msra.mxu0 0
    %608 = vmatprep.subr.bf16.mxu0 0
    %609 = vmatpush2.bf16.xpose.msra.mxu0 0
    %610 = vmatprep.subr.bf16.mxu0 0
    %611 = vmatpush2.bf16.xpose.msra.mxu0 0
    %612 = vmatprep.subr.bf16.mxu0 0
    %613 = vmatpush2.bf16.xpose.msra.mxu0 0
    %614 = vmatprep.subr.bf16.mxu0 0
    %615 = vmatpush2.bf16.xpose.msra.mxu0 0
    %616 = vmatprep.subr.bf16.mxu0 0
    %617 = vmatpush2.bf16.xpose.msra.mxu0 0
    %618 = vmatprep.subr.bf16.mxu0 0
    %619 = vmatpush2.bf16.xpose.msra.mxu0 0
    %620 = vmatprep.mubr.bf16.mxu0 0
    %621 = vmatmul.mubr.bf16.gmra.mxu0 %v587
    %v622 = vpop.f32.mrf.mxu0
    %v623 = vadd.f32 %v235, %v622
    %v624 = vpop.f32.mrf.mxu0
    %v625 = vpop.f32.mrf.mxu0
    %v626 = vadd.f32 %v236, %v625
    %v627 = vpop.f32.mrf.mxu0
    %628 = vdwg.mxu0
    %v629 = vsel %vm553, %v623, -inf
    %630 = vmax.xlane.f32.xlu0 %v629
    %v631 = vpop.xlane.xlu0 %630
    %v632 = vsel %vm553, %v626, -inf
    %633 = vmax.xlane.f32.xlu0 %v632
    %v634 = vpop.xlane.xlu0 %633
    %v635 = vsub.f32 %v623, %v631
    %v636 = vsub.f32 %v626, %v634
    %v637 = vmul.f32 %v635, 1.442695
    %v638 = vpow.pop %v637
    %v639 = vmul.f32 %v636, 1.442695
    %v640 = vpow.pop %v639
    %v641 = vsel %vm553, %v638, 0.0
    %642 = vadd.xlane.f32.xlu0 %v641
    %v643 = vpop.xlane.xlu0 %642
    %v644 = vsel %vm553, %v640, 0.0
    %645 = vadd.xlane.f32.xlu0 %v644
    %v646 = vpop.xlane.xlu0 %645
    %v647 = vrcp.pop %v643
    %v648 = vrcp.pop %v646
    %v649 = vmul.f32 %v638, %v647
    %v650 = vmul.f32 %v640, %v648
    %v651 = vmul.f32 %v495, %v584
    %v652 = vmul.f32 %v498, %v584
    %v653 = vpack.c.bf16 %v650, %v649
    %v654 = vpack.c.bf16 %v652, %v651
    %v656 = vsel %vm553, %v653, 0
    %658 = vmatprep.subr.bf16.mxu0 0
    %659 = vmatpush1.bf16.msra.mxu0 0
    %660 = vmatprep.subr.bf16.mxu0 0
    %661 = vmatpush1.bf16.msra.mxu0 0
    %662 = vmatprep.subr.bf16.mxu0 0
    %663 = vmatpush1.bf16.msra.mxu0 0
    %664 = vmatprep.subr.bf16.mxu0 0
    %665 = vmatpush1.bf16.msra.mxu0 0
    %666 = vmatprep.subr.bf16.mxu0 0
    %667 = vmatpush1.bf16.msra.mxu0 0
    %668 = vmatprep.subr.bf16.mxu0 0
    %669 = vmatpush1.bf16.msra.mxu0 0
    %670 = vmatprep.subr.bf16.mxu0 0
    %671 = vmatpush1.bf16.msra.mxu0 0
    %672 = vmatprep.subr.bf16.mxu0 0
    %673 = vmatpush1.bf16.msra.mxu0 %v654
    %674 = vmatprep.subr.bf16.mxu0 0
    %675 = vmatpush2.bf16.msra.mxu0 0
    %676 = vmatprep.subr.bf16.mxu0 0
    %677 = vmatpush2.bf16.msra.mxu0 0
    %678 = vmatprep.subr.bf16.mxu0 0
    %679 = vmatpush2.bf16.msra.mxu0 0
    %680 = vmatprep.subr.bf16.mxu0 0
    %681 = vmatpush2.bf16.msra.mxu0 0
    %682 = vmatprep.subr.bf16.mxu0 0
    %683 = vmatpush2.bf16.msra.mxu0 0
    %684 = vmatprep.subr.bf16.mxu0 0
    %685 = vmatpush2.bf16.msra.mxu0 0
    %686 = vmatprep.subr.bf16.mxu0 0
    %687 = vmatpush2.bf16.msra.mxu0 0
    %688 = vmatprep.subr.bf16.mxu0 0
    %689 = vmatpush2.bf16.msra.mxu0 0
    %690 = vmatprep.mubr.bf16.mxu0 0
    %691 = vmatmul.mubr.bf16.gmra.mxu0 %v656
    %v692 = vpop.f32.mrf.mxu0
    %v693 = vadd.f32 0.0, %v692
    %v694 = vpop.f32.mrf.mxu0
    %v695 = vpop.f32.mrf.mxu0
    %v696 = vadd.f32 0.0, %v695
    %v697 = vpop.f32.mrf.mxu0
    %698 = vdwg.mxu0
    %v700 = vsel %vm553, %v578, 0
    %702 = vmatprep.subr.bf16.mxu0 0
    %703 = vmatpush1.bf16.msra.mxu0 0
    %704 = vmatprep.subr.bf16.mxu0 0
    %705 = vmatpush1.bf16.msra.mxu0 0
    %706 = vmatprep.subr.bf16.mxu0 0
    %707 = vmatpush1.bf16.msra.mxu0 0
    %708 = vmatprep.subr.bf16.mxu0 0
    %709 = vmatpush1.bf16.msra.mxu0 0
    %710 = vmatprep.subr.bf16.mxu0 0
    %711 = vmatpush1.bf16.msra.mxu0 0
    %712 = vmatprep.subr.bf16.mxu0 0
    %713 = vmatpush1.bf16.msra.mxu0 0
    %714 = vmatprep.subr.bf16.mxu0 0
    %715 = vmatpush1.bf16.msra.mxu0 0
    %716 = vmatprep.subr.bf16.mxu0 0
    %717 = vmatpush1.bf16.msra.mxu0 %v579
    %718 = vmatprep.subr.bf16.mxu0 0
    %719 = vmatpush2.bf16.msra.mxu0 0
    %720 = vmatprep.subr.bf16.mxu0 0
    %721 = vmatpush2.bf16.msra.mxu0 0
    %722 = vmatprep.subr.bf16.mxu0 0
    %723 = vmatpush2.bf16.msra.mxu0 0
    %724 = vmatprep.subr.bf16.mxu0 0
    %725 = vmatpush2.bf16.msra.mxu0 0
    %726 = vmatprep.subr.bf16.mxu0 0
    %727 = vmatpush2.bf16.msra.mxu0 0
    %728 = vmatprep.subr.bf16.mxu0 0
    %729 = vmatpush2.bf16.msra.mxu0 0
    %730 = vmatprep.subr.bf16.mxu0 0
    %731 = vmatpush2.bf16.msra.mxu0 0
    %732 = vmatprep.subr.bf16.mxu0 0
    %733 = vmatpush2.bf16.msra.mxu0 0
    %734 = vmatprep.mubr.bf16.mxu0 0
    %735 = vmatmul.mubr.bf16.gmra.mxu0 %v700
    %v736 = vpop.f32.mrf.mxu0
    %v737 = vadd.f32 %v693, %v736
    %v738 = vpop.f32.mrf.mxu0
    %v739 = vpop.f32.mrf.mxu0
    %v740 = vadd.f32 %v696, %v739
    %v741 = vpop.f32.mrf.mxu0
    %742 = vdwg.mxu0
    %v743 = vld [vmem:[#allocation10] sm:$0xf]
    %v744 = vld [vmem:[#allocation10 + $0x4] sm:$0xf]
    %v745 = vld [vmem:[#allocation10 + $0x8] sm:$0xf]
    %v746 = vld [vmem:[#allocation10 + $0xc] sm:$0xf]
    %v747 = vld [vmem:[#allocation10 + $0x10] sm:$0xf]
    %v748 = vld [vmem:[#allocation10 + $0x14] sm:$0xf]
    %v749 = vld [vmem:[#allocation10 + $0x18] sm:$0xf]
    %v750 = vld [vmem:[#allocation10 + $0x1c] sm:$0xf]
    %v751 = vld [vmem:[#allocation10 + $0x20] sm:$0xf]
    %v752 = vld [vmem:[#allocation10 + $0x24] sm:$0xf]
    %v753 = vld [vmem:[#allocation10 + $0x28] sm:$0xf]
    %v754 = vld [vmem:[#allocation10 + $0x2c] sm:$0xf]
    %v755 = vld [vmem:[#allocation10 + $0x30] sm:$0xf]
    %v756 = vld [vmem:[#allocation10 + $0x34] sm:$0xf]
    %v757 = vld [vmem:[#allocation10 + $0x38] sm:$0xf]
    %v758 = vld [vmem:[#allocation10 + $0x3c] sm:$0xf]
    %v759 = vpack.c.bf16 %v740, %v737
    %v760 = vld [vmem:[#allocation11] sm:$0x1]
    %v762 = vlaneseq
    %v763 = vshrl.u32 %v762, 7
    %v764 = vsub.s32 0, %v763
    %v765 = vrot.slane %v760, %v764
    %v783 = vunpack.c.l.b16 %v743
    %v784 = vunpack.c.l.b16 %v744
    %v785 = vunpack.c.l.b16 %v745
    %v786 = vunpack.c.l.b16 %v746
    %v787 = vunpack.c.l.b16 %v747
    %v788 = vunpack.c.l.b16 %v748
    %v789 = vunpack.c.l.b16 %v749
    %v790 = vunpack.c.l.b16 %v750
    %v791 = vunpack.c.l.b16 %v751
    %v792 = vunpack.c.l.b16 %v752
    %v793 = vunpack.c.l.b16 %v753
    %v794 = vunpack.c.l.b16 %v754
    %v795 = vunpack.c.l.b16 %v755
    %v796 = vunpack.c.l.b16 %v756
    %v797 = vunpack.c.l.b16 %v757
    %v798 = vunpack.c.l.b16 %v758
    %v799 = vpack.c.b16 %v784, %v783
    %v800 = vpack.c.b16 %v786, %v785
    %v801 = vpack.c.b16 %v788, %v787
    %v802 = vpack.c.b16 %v790, %v789
    %v803 = vpack.c.b16 %v792, %v791
    %v804 = vpack.c.b16 %v794, %v793
    %v805 = vpack.c.b16 %v796, %v795
    %v806 = vpack.c.b16 %v798, %v797
    %815 = vmatprep.subr.bf16.mxu0 0
    %816 = vmatpush1.bf16.msra.mxu0 %v806
    %817 = vmatprep.subr.bf16.mxu0 0
    %818 = vmatpush1.bf16.msra.mxu0 %v805
    %819 = vmatprep.subr.bf16.mxu0 0
    %820 = vmatpush1.bf16.msra.mxu0 %v804
    %821 = vmatprep.subr.bf16.mxu0 0
    %822 = vmatpush1.bf16.msra.mxu0 %v803
    %823 = vmatprep.subr.bf16.mxu0 0
    %824 = vmatpush1.bf16.msra.mxu0 %v802
    %825 = vmatprep.subr.bf16.mxu0 0
    %826 = vmatpush1.bf16.msra.mxu0 %v801
    %827 = vmatprep.subr.bf16.mxu0 0
    %828 = vmatpush1.bf16.msra.mxu0 %v800
    %829 = vmatprep.subr.bf16.mxu0 0
    %830 = vmatpush1.bf16.msra.mxu0 %v799
    %831 = vmatprep.subr.bf16.mxu0 0
    %832 = vmatpush2.bf16.msra.mxu0 0
    %833 = vmatprep.subr.bf16.mxu0 0
    %834 = vmatpush2.bf16.msra.mxu0 0
    %835 = vmatprep.subr.bf16.mxu0 0
    %836 = vmatpush2.bf16.msra.mxu0 0
    %837 = vmatprep.subr.bf16.mxu0 0
    %838 = vmatpush2.bf16.msra.mxu0 0
    %839 = vmatprep.subr.bf16.mxu0 0
    %840 = vmatpush2.bf16.msra.mxu0 0
    %841 = vmatprep.subr.bf16.mxu0 0
    %842 = vmatpush2.bf16.msra.mxu0 0
    %843 = vmatprep.subr.bf16.mxu0 0
    %844 = vmatpush2.bf16.msra.mxu0 0
    %845 = vmatprep.subr.bf16.mxu0 0
    %846 = vmatpush2.bf16.msra.mxu0 0
    %847 = vmatprep.mubr.bf16.mxu0 0
    %848 = vmatmul.mubr.bf16.gmra.mxu0 %v759
    %v849 = vpop.f32.mrf.mxu0
    %v850 = vadd.f32 %v765, %v849
    %v851 = vpop.f32.mrf.mxu0
    %v852 = vpop.f32.mrf.mxu0
    %v853 = vadd.f32 %v765, %v852
    %v854 = vpop.f32.mrf.mxu0
    %855 = vdwg.mxu0
    %v856 = vadd.f32 %v233, %v850
    %v857 = vadd.f32 %v234, %v853
    %v858 = vld [vmem:[%s7] sm:$0x3]
    %859 = vadd.xlane.f32.xlu0 %v856
    %v860 = vpop.xlane.xlu0 %859
    %861 = vadd.xlane.f32.xlu0 %v857
    %v862 = vpop.xlane.xlu0 %861
    %v863 = vmul.f32 %v860, 0.03125
    %v864 = vmul.f32 %v862, 0.03125
    %v865 = vmul.f32 %v856, %v856
    %v866 = vmul.f32 %v857, %v857
    %867 = vadd.xlane.f32.xlu0 %v865
    %v868 = vpop.xlane.xlu0 %867
    %869 = vadd.xlane.f32.xlu0 %v866
    %v870 = vpop.xlane.xlu0 %869
    %v871 = vmul.f32 %v868, 0.03125
    %v872 = vmul.f32 %v870, 0.03125
    %v873 = vmul.f32 %v863, %v863
    %v874 = vmul.f32 %v864, %v864
    %v875 = vsub.f32 %v871, %v873
    %v876 = vsub.f32 %v872, %v874
    %v877 = vmax.f32 %v875, 0.0
    %v878 = vmax.f32 %v876, 0.0
    %v879 = vsub.f32 %v856, %v863
    %v880 = vsub.f32 %v857, %v864
    %v881 = vadd.f32 %v877, 1e-12
    %v882 = vadd.f32 %v878, 1e-12
    %v883 = vrsqrt.pop %v881
    %v884 = vrsqrt.pop %v882
    %v885 = vmul.f32 %v879, %v883
    %v886 = vmul.f32 %v880, %v884
    %v887 = vlaneseq
    %v888 = vshrl.u32 %v887, 7
    %v889 = vsub.s32 0, %v888
    %v890 = vrot.slane %v858, %v889
    %v891 = vmul.f32 %v885, %v890
    %v892 = vmul.f32 %v886, %v890
    %v893 = vlaneseq
    %v894 = vshrl.u32 %v893, 7
    %v895 = vsub.s32 1, %v894
    %v896 = vrot.slane %v858, %v895
    %v897 = vadd.f32 %v891, %v896
    %v898 = vadd.f32 %v892, %v896
    %v899 = vld [vmem:[#allocation13] sm:$0xf]
    %v900 = vld [vmem:[#allocation13 + $0x4] sm:$0xf]
    %v901 = vld [vmem:[#allocation13 + $0x8] sm:$0xf]
    %v902 = vld [vmem:[#allocation13 + $0xc] sm:$0xf]
    %v903 = vld [vmem:[#allocation13 + $0x10] sm:$0xf]
    %v904 = vld [vmem:[#allocation13 + $0x14] sm:$0xf]
    %v905 = vld [vmem:[#allocation13 + $0x18] sm:$0xf]
    %v906 = vld [vmem:[#allocation13 + $0x1c] sm:$0xf]
    %v907 = vld [vmem:[#allocation13 + $0x20] sm:$0xf]
    %v908 = vld [vmem:[#allocation13 + $0x24] sm:$0xf]
    %v909 = vld [vmem:[#allocation13 + $0x28] sm:$0xf]
    %v910 = vld [vmem:[#allocation13 + $0x2c] sm:$0xf]
    %v911 = vld [vmem:[#allocation13 + $0x30] sm:$0xf]
    %v912 = vld [vmem:[#allocation13 + $0x34] sm:$0xf]
    %v913 = vld [vmem:[#allocation13 + $0x38] sm:$0xf]
    %v914 = vld [vmem:[#allocation13 + $0x3c] sm:$0xf]
    %v915 = vpack.c.bf16 %v898, %v897
    %v916 = vld [vmem:[%s9] sm:$0x1]
    %v918 = vlaneseq
    %v919 = vshrl.u32 %v918, 7
    %v920 = vsub.s32 0, %v919
    %v921 = vrot.slane %v916, %v920
    %v939 = vunpack.c.l.b16 %v899
    %v940 = vunpack.c.l.b16 %v900
    %v941 = vunpack.c.l.b16 %v901
    %v942 = vunpack.c.l.b16 %v902
    %v943 = vunpack.c.l.b16 %v903
    %v944 = vunpack.c.l.b16 %v904
    %v945 = vunpack.c.l.b16 %v905
    %v946 = vunpack.c.l.b16 %v906
    %v947 = vunpack.c.l.b16 %v907
    %v948 = vunpack.c.l.b16 %v908
    %v949 = vunpack.c.l.b16 %v909
    %v950 = vunpack.c.l.b16 %v910
    %v951 = vunpack.c.l.b16 %v911
    %v952 = vunpack.c.l.b16 %v912
    %v953 = vunpack.c.l.b16 %v913
    %v954 = vunpack.c.l.b16 %v914
    %v955 = vpack.c.b16 %v940, %v939
    %v956 = vpack.c.b16 %v942, %v941
    %v957 = vpack.c.b16 %v944, %v943
    %v958 = vpack.c.b16 %v946, %v945
    %v959 = vpack.c.b16 %v948, %v947
    %v960 = vpack.c.b16 %v950, %v949
    %v961 = vpack.c.b16 %v952, %v951
    %v962 = vpack.c.b16 %v954, %v953
    %971 = vmatprep.subr.bf16.mxu0 0
    %972 = vmatpush1.bf16.msra.mxu0 %v962
    %973 = vmatprep.subr.bf16.mxu0 0
    %974 = vmatpush1.bf16.msra.mxu0 %v961
    %975 = vmatprep.subr.bf16.mxu0 0
    %976 = vmatpush1.bf16.msra.mxu0 %v960
    %977 = vmatprep.subr.bf16.mxu0 0
    %978 = vmatpush1.bf16.msra.mxu0 %v959
    %979 = vmatprep.subr.bf16.mxu0 0
    %980 = vmatpush1.bf16.msra.mxu0 %v958
    %981 = vmatprep.subr.bf16.mxu0 0
    %982 = vmatpush1.bf16.msra.mxu0 %v957
    %983 = vmatprep.subr.bf16.mxu0 0
    %984 = vmatpush1.bf16.msra.mxu0 %v956
    %985 = vmatprep.subr.bf16.mxu0 0
    %986 = vmatpush1.bf16.msra.mxu0 %v955
    %987 = vmatprep.subr.bf16.mxu0 0
    %988 = vmatpush2.bf16.msra.mxu0 0
    %989 = vmatprep.subr.bf16.mxu0 0
    %990 = vmatpush2.bf16.msra.mxu0 0
    %991 = vmatprep.subr.bf16.mxu0 0
    %992 = vmatpush2.bf16.msra.mxu0 0
    %993 = vmatprep.subr.bf16.mxu0 0
    %994 = vmatpush2.bf16.msra.mxu0 0
    %995 = vmatprep.subr.bf16.mxu0 0
    %996 = vmatpush2.bf16.msra.mxu0 0
    %997 = vmatprep.subr.bf16.mxu0 0
    %998 = vmatpush2.bf16.msra.mxu0 0
    %999 = vmatprep.subr.bf16.mxu0 0
    %1000 = vmatpush2.bf16.msra.mxu0 0
    %1001 = vmatprep.subr.bf16.mxu0 0
    %1002 = vmatpush2.bf16.msra.mxu0 0
    %1003 = vmatprep.mubr.bf16.mxu0 0
    %1004 = vmatmul.mubr.bf16.gmra.mxu0 %v915
    %v1005 = vpop.f32.mrf.mxu0
    %v1006 = vadd.f32 %v921, %v1005
    %v1007 = vpop.f32.mrf.mxu0
    %v1008 = vpop.f32.mrf.mxu0
    %v1009 = vadd.f32 %v921, %v1008
    %v1010 = vpop.f32.mrf.mxu0
    %1011 = vdwg.mxu0
    %v1012 = vmul.f32 %v1006, 0.5
    %v1013 = vmul.f32 %v1009, 0.5
    %v1014 = vmul.f32 %v1006, 0.044715
    %v1015 = vmul.f32 %v1009, 0.044715
    %v1016 = vmul.f32 %v1014, %v1006
    %v1017 = vmul.f32 %v1015, %v1009
    %v1018 = vmul.f32 %v1016, %v1006
    %v1019 = vmul.f32 %v1017, %v1009
    %v1020 = vadd.f32 %v1006, %v1018
    %v1021 = vadd.f32 %v1009, %v1019
    %v1022 = vmul.f32 %v1020, 0.7978846
    %v1023 = vmul.f32 %v1021, 0.7978846
    %v1024 = vtanh.pop %v1022
    %v1025 = vtanh.pop %v1023
    %v1026 = vadd.f32 %v1024, 1.0
    %v1027 = vadd.f32 %v1025, 1.0
    %v1028 = vmul.f32 %v1012, %v1026
    %v1029 = vmul.f32 %v1013, %v1027
    %v1030 = vld [vmem:[#allocation14] sm:$0xf]
    %v1031 = vld [vmem:[#allocation14 + $0x4] sm:$0xf]
    %v1032 = vld [vmem:[#allocation14 + $0x8] sm:$0xf]
    %v1033 = vld [vmem:[#allocation14 + $0xc] sm:$0xf]
    %v1034 = vld [vmem:[#allocation14 + $0x10] sm:$0xf]
    %v1035 = vld [vmem:[#allocation14 + $0x14] sm:$0xf]
    %v1036 = vld [vmem:[#allocation14 + $0x18] sm:$0xf]
    %v1037 = vld [vmem:[#allocation14 + $0x1c] sm:$0xf]
    %v1038 = vld [vmem:[#allocation14 + $0x20] sm:$0xf]
    %v1039 = vld [vmem:[#allocation14 + $0x24] sm:$0xf]
    %v1040 = vld [vmem:[#allocation14 + $0x28] sm:$0xf]
    %v1041 = vld [vmem:[#allocation14 + $0x2c] sm:$0xf]
    %v1042 = vld [vmem:[#allocation14 + $0x30] sm:$0xf]
    %v1043 = vld [vmem:[#allocation14 + $0x34] sm:$0xf]
    %v1044 = vld [vmem:[#allocation14 + $0x38] sm:$0xf]
    %v1045 = vld [vmem:[#allocation14 + $0x3c] sm:$0xf]
    %v1046 = vpack.c.bf16 %v1029, %v1028
    %v1047 = vld [vmem:[%s11] sm:$0x1]
    %v1049 = vlaneseq
    %v1050 = vshrl.u32 %v1049, 7
    %v1051 = vsub.s32 0, %v1050
    %v1052 = vrot.slane %v1047, %v1051
    %v1070 = vunpack.c.l.b16 %v1030
    %v1071 = vunpack.c.l.b16 %v1031
    %v1072 = vunpack.c.l.b16 %v1032
    %v1073 = vunpack.c.l.b16 %v1033
    %v1074 = vunpack.c.l.b16 %v1034
    %v1075 = vunpack.c.l.b16 %v1035
    %v1076 = vunpack.c.l.b16 %v1036
    %v1077 = vunpack.c.l.b16 %v1037
    %v1078 = vunpack.c.l.b16 %v1038
    %v1079 = vunpack.c.l.b16 %v1039
    %v1080 = vunpack.c.l.b16 %v1040
    %v1081 = vunpack.c.l.b16 %v1041
    %v1082 = vunpack.c.l.b16 %v1042
    %v1083 = vunpack.c.l.b16 %v1043
    %v1084 = vunpack.c.l.b16 %v1044
    %v1085 = vunpack.c.l.b16 %v1045
    %v1086 = vpack.c.b16 %v1071, %v1070
    %v1087 = vpack.c.b16 %v1073, %v1072
    %v1088 = vpack.c.b16 %v1075, %v1074
    %v1089 = vpack.c.b16 %v1077, %v1076
    %v1090 = vpack.c.b16 %v1079, %v1078
    %v1091 = vpack.c.b16 %v1081, %v1080
    %v1092 = vpack.c.b16 %v1083, %v1082
    %v1093 = vpack.c.b16 %v1085, %v1084
    %1102 = vmatprep.subr.bf16.mxu0 0
    %1103 = vmatpush1.bf16.msra.mxu0 %v1093
    %1104 = vmatprep.subr.bf16.mxu0 0
    %1105 = vmatpush1.bf16.msra.mxu0 %v1092
    %1106 = vmatprep.subr.bf16.mxu0 0
    %1107 = vmatpush1.bf16.msra.mxu0 %v1091
    %1108 = vmatprep.subr.bf16.mxu0 0
    %1109 = vmatpush1.bf16.msra.mxu0 %v1090
    %1110 = vmatprep.subr.bf16.mxu0 0
    %1111 = vmatpush1.bf16.msra.mxu0 %v1089
    %1112 = vmatprep.subr.bf16.mxu0 0
    %1113 = vmatpush1.bf16.msra.mxu0 %v1088
    %1114 = vmatprep.subr.bf16.mxu0 0
    %1115 = vmatpush1.bf16.msra.mxu0 %v1087
    %1116 = vmatprep.subr.bf16.mxu0 0
    %1117 = vmatpush1.bf16.msra.mxu0 %v1086
    %1118 = vmatprep.subr.bf16.mxu0 0
    %1119 = vmatpush2.bf16.msra.mxu0 0
    %1120 = vmatprep.subr.bf16.mxu0 0
    %1121 = vmatpush2.bf16.msra.mxu0 0
    %1122 = vmatprep.subr.bf16.mxu0 0
    %1123 = vmatpush2.bf16.msra.mxu0 0
    %1124 = vmatprep.subr.bf16.mxu0 0
    %1125 = vmatpush2.bf16.msra.mxu0 0
    %1126 = vmatprep.subr.bf16.mxu0 0
    %1127 = vmatpush2.bf16.msra.mxu0 0
    %1128 = vmatprep.subr.bf16.mxu0 0
    %1129 = vmatpush2.bf16.msra.mxu0 0
    %1130 = vmatprep.subr.bf16.mxu0 0
    %1131 = vmatpush2.bf16.msra.mxu0 0
    %1132 = vmatprep.subr.bf16.mxu0 0
    %1133 = vmatpush2.bf16.msra.mxu0 0
    %1134 = vmatprep.mubr.bf16.mxu0 0
    %1135 = vmatmul.mubr.bf16.gmra.mxu0 %v1046
    %v1136 = vpop.f32.mrf.mxu0
    %v1137 = vadd.f32 %v1052, %v1136
    %v1138 = vpop.f32.mrf.mxu0
    %v1139 = vpop.f32.mrf.mxu0
    %v1140 = vadd.f32 %v1052, %v1139
    %v1141 = vpop.f32.mrf.mxu0
    %1142 = vdwg.mxu0
    %v1143 = vadd.f32 %v897, %v1137
    %v1144 = vadd.f32 %v898, %v1140
    %v1145 = vld [vmem:[%s12] sm:$0x3]
    %1146 = vadd.xlane.f32.xlu0 %v1143
    %v1147 = vpop.xlane.xlu0 %1146
    %1148 = vadd.xlane.f32.xlu0 %v1144
    %v1149 = vpop.xlane.xlu0 %1148
    %v1150 = vmul.f32 %v1147, 0.03125
    %v1151 = vmul.f32 %v1149, 0.03125
    %v1152 = vmul.f32 %v1143, %v1143
    %v1153 = vmul.f32 %v1144, %v1144
    %1154 = vadd.xlane.f32.xlu0 %v1152
    %v1155 = vpop.xlane.xlu0 %1154
    %1156 = vadd.xlane.f32.xlu0 %v1153
    %v1157 = vpop.xlane.xlu0 %1156
    %v1158 = vmul.f32 %v1155, 0.03125
    %v1159 = vmul.f32 %v1157, 0.03125
    %v1160 = vmul.f32 %v1150, %v1150
    %v1161 = vmul.f32 %v1151, %v1151
    %v1162 = vsub.f32 %v1158, %v1160
    %v1163 = vsub.f32 %v1159, %v1161
    %v1164 = vmax.f32 %v1162, 0.0
    %v1165 = vmax.f32 %v1163, 0.0
    %v1166 = vsub.f32 %v1143, %v1150
    %v1167 = vsub.f32 %v1144, %v1151
    %v1168 = vadd.f32 %v1164, 1e-12
    %v1169 = vadd.f32 %v1165, 1e-12
    %v1170 = vrsqrt.pop %v1168
    %v1171 = vrsqrt.pop %v1169
    %v1172 = vmul.f32 %v1166, %v1170
    %v1173 = vmul.f32 %v1167, %v1171
    %v1174 = vlaneseq
    %v1175 = vshrl.u32 %v1174, 7
    %v1176 = vsub.s32 0, %v1175
    %v1177 = vrot.slane %v1145, %v1176
    %v1178 = vmul.f32 %v1172, %v1177
    %v1179 = vmul.f32 %v1173, %v1177
    %v1180 = vlaneseq
    %v1181 = vshrl.u32 %v1180, 7
    %v1182 = vsub.s32 1, %v1181
    %v1183 = vrot.slane %v1145, %v1182
    %v1184 = vadd.f32 %v1178, %v1183
    %v1185 = vadd.f32 %v1179, %v1183
    %s1186 = scalar_lea.vmem [#allocation8], 192
    %v1187 = vld [vmem:[%s1186] sm:$0xff]
    %v1188 = vld [vmem:[%s1186 + $0x8] sm:$0xf]
    %v1189 = vld [vmem:[%s1186 + $0xc] sm:$0xff]
    %v1190 = vld [vmem:[%s1186 + $0x14] sm:$0xf]
    %v1191 = vld [vmem:[%s1186 + $0x18] sm:$0xff]
    %v1192 = vld [vmem:[%s1186 + $0x20] sm:$0xf]
    %v1193 = vld [vmem:[%s1186 + $0x24] sm:$0xff]
    %v1194 = vld [vmem:[%s1186 + $0x2c] sm:$0xf]
    %v1195 = vld [vmem:[%s1186 + $0x30] sm:$0xff]
    %v1196 = vld [vmem:[%s1186 + $0x38] sm:$0xf]
    %v1197 = vld [vmem:[%s1186 + $0x3c] sm:$0xff]
    %v1198 = vld [vmem:[%s1186 + $0x44] sm:$0xf]
    %v1199 = vld [vmem:[%s1186 + $0x48] sm:$0xff]
    %v1200 = vld [vmem:[%s1186 + $0x50] sm:$0xf]
    %v1201 = vld [vmem:[%s1186 + $0x54] sm:$0xff]
    %v1202 = vld [vmem:[%s1186 + $0x5c] sm:$0xf]
    %v1203 = vld [vmem:[%s1186 + $0x60] sm:$0xff]
    %v1204 = vld [vmem:[%s1186 + $0x68] sm:$0xf]
    %v1205 = vld [vmem:[%s1186 + $0x6c] sm:$0xff]
    %v1206 = vld [vmem:[%s1186 + $0x74] sm:$0xf]
    %v1207 = vld [vmem:[%s1186 + $0x78] sm:$0xff]
    %v1208 = vld [vmem:[%s1186 + $0x80] sm:$0xf]
    %v1209 = vld [vmem:[%s1186 + $0x84] sm:$0xff]
    %v1210 = vld [vmem:[%s1186 + $0x8c] sm:$0xf]
    %v1211 = vld [vmem:[%s1186 + $0x90] sm:$0xff]
    %v1212 = vld [vmem:[%s1186 + $0x98] sm:$0xf]
    %v1213 = vld [vmem:[%s1186 + $0x9c] sm:$0xff]
    %v1214 = vld [vmem:[%s1186 + $0xa4] sm:$0xf]
    %v1215 = vld [vmem:[%s1186 + $0xa8] sm:$0xff]
    %v1216 = vld [vmem:[%s1186 + $0xb0] sm:$0xf]
    %v1217 = vld [vmem:[%s1186 + $0xb4] sm:$0xff]
    %v1218 = vld [vmem:[%s1186 + $0xbc] sm:$0xf]
    %v1219 = vpack.c.bf16 %v1185, %v1184
    %s1220 = scalar_lea.vmem %s4, 3
    %v1221 = vld [vmem:[%s1220] sm:$0x7]
    %v1223 = vlaneseq
    %v1224 = vshrl.u32 %v1223, 7
    %v1225 = vsub.s32 0, %v1224
    %v1226 = vrot.slane %v1221, %v1225
    %v1227 = vlaneseq
    %v1228 = vshrl.u32 %v1227, 7
    %v1229 = vsub.s32 1, %v1228
    %v1230 = vrot.slane %v1221, %v1229
    %v1231 = vlaneseq
    %v1232 = vshrl.u32 %v1231, 7
    %v1233 = vsub.s32 2, %v1232
    %v1234 = vrot.slane %v1221, %v1233
    %v1270 = vunpack.c.l.b16 %v1187
    %v1271 = vunpack.c.h.b16 %v1187
    %v1272 = vunpack.c.l.b16 %v1188
    %v1273 = vunpack.c.l.b16 %v1189
    %v1274 = vunpack.c.h.b16 %v1189
    %v1275 = vunpack.c.l.b16 %v1190
    %v1276 = vunpack.c.l.b16 %v1191
    %v1277 = vunpack.c.h.b16 %v1191
    %v1278 = vunpack.c.l.b16 %v1192
    %v1279 = vunpack.c.l.b16 %v1193
    %v1280 = vunpack.c.h.b16 %v1193
    %v1281 = vunpack.c.l.b16 %v1194
    %v1282 = vunpack.c.l.b16 %v1195
    %v1283 = vunpack.c.h.b16 %v1195
    %v1284 = vunpack.c.l.b16 %v1196
    %v1285 = vunpack.c.l.b16 %v1197
    %v1286 = vunpack.c.h.b16 %v1197
    %v1287 = vunpack.c.l.b16 %v1198
    %v1288 = vunpack.c.l.b16 %v1199
    %v1289 = vunpack.c.h.b16 %v1199
    %v1290 = vunpack.c.l.b16 %v1200
    %v1291 = vunpack.c.l.b16 %v1201
    %v1292 = vunpack.c.h.b16 %v1201
    %v1293 = vunpack.c.l.b16 %v1202
    %v1294 = vunpack.c.l.b16 %v1203
    %v1295 = vunpack.c.h.b16 %v1203
    %v1296 = vunpack.c.l.b16 %v1204
    %v1297 = vunpack.c.l.b16 %v1205
    %v1298 = vunpack.c.h.b16 %v1205
    %v1299 = vunpack.c.l.b16 %v1206
    %v1300 = vunpack.c.l.b16 %v1207
    %v1301 = vunpack.c.h.b16 %v1207
    %v1302 = vunpack.c.l.b16 %v1208
    %v1303 = vunpack.c.l.b16 %v1209
    %v1304 = vunpack.c.h.b16 %v1209
    %v1305 = vunpack.c.l.b16 %v1210
    %v1306 = vunpack.c.l.b16 %v1211
    %v1307 = vunpack.c.h.b16 %v1211
    %v1308 = vunpack.c.l.b16 %v1212
    %v1309 = vunpack.c.l.b16 %v1213
    %v1310 = vunpack.c.h.b16 %v1213
    %v1311 = vunpack.c.l.b16 %v1214
    %v1312 = vunpack.c.l.b16 %v1215
    %v1313 = vunpack.c.h.b16 %v1215
    %v1314 = vunpack.c.l.b16 %v1216
    %v1315 = vunpack.c.l.b16 %v1217
    %v1316 = vunpack.c.h.b16 %v1217
    %v1317 = vunpack.c.l.b16 %v1218
    %v1318 = vpack.c.b16 %v1273, %v1270
    %v1319 = vpack.c.b16 %v1274, %v1271
    %v1320 = vpack.c.b16 %v1275, %v1272
    %v1321 = vpack.c.b16 %v1279, %v1276
    %v1322 = vpack.c.b16 %v1280, %v1277
    %v1323 = vpack.c.b16 %v1281, %v1278
    %v1324 = vpack.c.b16 %v1285, %v1282
    %v1325 = vpack.c.b16 %v1286, %v1283
    %v1326 = vpack.c.b16 %v1287, %v1284
    %v1327 = vpack.c.b16 %v1291, %v1288
    %v1328 = vpack.c.b16 %v1292, %v1289
    %v1329 = vpack.c.b16 %v1293, %v1290
    %v1330 = vpack.c.b16 %v1297, %v1294
    %v1331 = vpack.c.b16 %v1298, %v1295
    %v1332 = vpack.c.b16 %v1299, %v1296
    %v1333 = vpack.c.b16 %v1303, %v1300
    %v1334 = vpack.c.b16 %v1304, %v1301
    %v1335 = vpack.c.b16 %v1305, %v1302
    %v1336 = vpack.c.b16 %v1309, %v1306
    %v1337 = vpack.c.b16 %v1310, %v1307
    %v1338 = vpack.c.b16 %v1311, %v1308
    %v1339 = vpack.c.b16 %v1315, %v1312
    %v1340 = vpack.c.b16 %v1316, %v1313
    %v1341 = vpack.c.b16 %v1317, %v1314
    %1366 = vmatprep.subr.bf16.mxu0 %v1340
    %1367 = vmatpush1.bf16.msra.mxu0 %v1339
    %1368 = vmatprep.subr.bf16.mxu0 %v1337
    %1369 = vmatpush1.bf16.msra.mxu0 %v1336
    %1370 = vmatprep.subr.bf16.mxu0 %v1334
    %1371 = vmatpush1.bf16.msra.mxu0 %v1333
    %1372 = vmatprep.subr.bf16.mxu0 %v1331
    %1373 = vmatpush1.bf16.msra.mxu0 %v1330
    %1374 = vmatprep.subr.bf16.mxu0 %v1328
    %1375 = vmatpush1.bf16.msra.mxu0 %v1327
    %1376 = vmatprep.subr.bf16.mxu0 %v1325
    %1377 = vmatpush1.bf16.msra.mxu0 %v1324
    %1378 = vmatprep.subr.bf16.mxu0 %v1322
    %1379 = vmatpush1.bf16.msra.mxu0 %v1321
    %1380 = vmatprep.subr.bf16.mxu0 %v1319
    %1381 = vmatpush1.bf16.msra.mxu0 %v1318
    %1382 = vmatprep.subr.bf16.mxu0 0
    %1383 = vmatpush2.bf16.msra.mxu0 0
    %1384 = vmatprep.subr.bf16.mxu0 0
    %1385 = vmatpush2.bf16.msra.mxu0 0
    %1386 = vmatprep.subr.bf16.mxu0 0
    %1387 = vmatpush2.bf16.msra.mxu0 0
    %1388 = vmatprep.subr.bf16.mxu0 0
    %1389 = vmatpush2.bf16.msra.mxu0 0
    %1390 = vmatprep.subr.bf16.mxu0 0
    %1391 = vmatpush2.bf16.msra.mxu0 0
    %1392 = vmatprep.subr.bf16.mxu0 0
    %1393 = vmatpush2.bf16.msra.mxu0 0
    %1394 = vmatprep.subr.bf16.mxu0 0
    %1395 = vmatpush2.bf16.msra.mxu0 0
    %1396 = vmatprep.subr.bf16.mxu0 0
    %1397 = vmatpush2.bf16.msra.mxu0 0
    %1398 = vmatprep.mubr.bf16.mxu0 0
    %1399 = vmatmul.mubr.bf16.gmra.mxu0 %v1219
    %v1400 = vpop.f32.mrf.mxu0
    %v1401 = vadd.f32 %v1226, %v1400
    %v1402 = vpop.f32.mrf.mxu0
    %v1403 = vadd.f32 %v1230, %v1402
    %v1404 = vpop.f32.mrf.mxu0
    %v1405 = vadd.f32 %v1226, %v1404
    %v1406 = vpop.f32.mrf.mxu0
    %v1407 = vadd.f32 %v1230, %v1406
    %1408 = vdwg.mxu0
    %1409 = vmatprep.subr.bf16.mxu0 0
    %1410 = vmatpush1.bf16.msra.mxu0 %v1341
    %1411 = vmatprep.subr.bf16.mxu0 0
    %1412 = vmatpush1.bf16.msra.mxu0 %v1338
    %1413 = vmatprep.subr.bf16.mxu0 0
    %1414 = vmatpush1.bf16.msra.mxu0 %v1335
    %1415 = vmatprep.subr.bf16.mxu0 0
    %1416 = vmatpush1.bf16.msra.mxu0 %v1332
    %1417 = vmatprep.subr.bf16.mxu0 0
    %1418 = vmatpush1.bf16.msra.mxu0 %v1329
    %1419 = vmatprep.subr.bf16.mxu0 0
    %1420 = vmatpush1.bf16.msra.mxu0 %v1326
    %1421 = vmatprep.subr.bf16.mxu0 0
    %1422 = vmatpush1.bf16.msra.mxu0 %v1323
    %1423 = vmatprep.subr.bf16.mxu0 0
    %1424 = vmatpush1.bf16.msra.mxu0 %v1320
    %1425 = vmatprep.subr.bf16.mxu0 0
    %1426 = vmatpush2.bf16.msra.mxu0 0
    %1427 = vmatprep.subr.bf16.mxu0 0
    %1428 = vmatpush2.bf16.msra.mxu0 0
    %1429 = vmatprep.subr.bf16.mxu0 0
    %1430 = vmatpush2.bf16.msra.mxu0 0
    %1431 = vmatprep.subr.bf16.mxu0 0
    %1432 = vmatpush2.bf16.msra.mxu0 0
    %1433 = vmatprep.subr.bf16.mxu0 0
    %1434 = vmatpush2.bf16.msra.mxu0 0
    %1435 = vmatprep.subr.bf16.mxu0 0
    %1436 = vmatpush2.bf16.msra.mxu0 0
    %1437 = vmatprep.subr.bf16.mxu0 0
    %1438 = vmatpush2.bf16.msra.mxu0 0
    %1439 = vmatprep.subr.bf16.mxu0 0
    %1440 = vmatpush2.bf16.msra.mxu0 0
    %1441 = vmatprep.mubr.bf16.mxu0 0
    %1442 = vmatmul.mubr.bf16.gmra.mxu0 %v1219
    %v1443 = vpop.f32.mrf.mxu0
    %v1444 = vadd.f32 %v1234, %v1443
    %v1445 = vpop.f32.mrf.mxu0
    %v1446 = vpop.f32.mrf.mxu0
    %v1447 = vadd.f32 %v1234, %v1446
    %v1448 = vpop.f32.mrf.mxu0
    %1449 = vdwg.mxu0
    %v1450 = vmul.f32 %v1401, 0.25
    %v1451 = vmul.f32 %v1405, 0.25
    %v1452 = vmul.f32 %v1450, %v507
    %v1453 = vmul.f32 %v1451, %v507
    %v1454 = vpack.c.bf16 %v1453, %v1452
    %v1455 = vpack.c.bf16 %v1407, %v1403
    %1456 = vmatprep.subr.bf16.mxu0 0
    %1457 = vmatpush1.bf16.xpose.msra.mxu0 0
    %1458 = vmatprep.subr.bf16.mxu0 0
    %1459 = vmatpush1.bf16.xpose.msra.mxu0 0
    %1460 = vmatprep.subr.bf16.mxu0 0
    %1461 = vmatpush1.bf16.xpose.msra.mxu0 0
    %1462 = vmatprep.subr.bf16.mxu0 0
    %1463 = vmatpush1.bf16.xpose.msra.mxu0 0
    %1464 = vmatprep.subr.bf16.mxu0 0
    %1465 = vmatpush1.bf16.xpose.msra.mxu0 0
    %1466 = vmatprep.subr.bf16.mxu0 0
    %1467 = vmatpush1.bf16.xpose.msra.mxu0 0
    %1468 = vmatprep.subr.bf16.mxu0 0
    %1469 = vmatpush1.bf16.xpose.msra.mxu0 0
    %1470 = vmatprep.subr.bf16.mxu0 0
    %1471 = vmatpush1.bf16.xpose.msra.mxu0 %v1455
    %1472 = vmatprep.subr.bf16.mxu0 0
    %1473 = vmatpush2.bf16.xpose.msra.mxu0 0
    %1474 = vmatprep.subr.bf16.mxu0 0
    %1475 = vmatpush2.bf16.xpose.msra.mxu0 0
    %1476 = vmatprep.subr.bf16.mxu0 0
    %1477 = vmatpush2.bf16.xpose.msra.mxu0 0
    %1478 = vmatprep.subr.bf16.mxu0 0
    %1479 = vmatpush2.bf16.xpose.msra.mxu0 0
    %1480 = vmatprep.subr.bf16.mxu0 0
    %1481 = vmatpush2.bf16.xpose.msra.mxu0 0
    %1482 = vmatprep.subr.bf16.mxu0 0
    %1483 = vmatpush2.bf16.xpose.msra.mxu0 0
    %1484 = vmatprep.subr.bf16.mxu0 0
    %1485 = vmatpush2.bf16.xpose.msra.mxu0 0
    %1486 = vmatprep.subr.bf16.mxu0 0
    %1487 = vmatpush2.bf16.xpose.msra.mxu0 0
    %1488 = vmatprep.mubr.bf16.mxu0 0
    %1489 = vmatmul.mubr.bf16.gmra.mxu0 %v1454
    %v1490 = vpop.f32.mrf.mxu0
    %v1491 = vadd.f32 %v235, %v1490
    %v1492 = vpop.f32.mrf.mxu0
    %v1493 = vpop.f32.mrf.mxu0
    %v1494 = vadd.f32 %v236, %v1493
    %v1495 = vpop.f32.mrf.mxu0
    %1496 = vdwg.mxu0
    %v1497 = vsel %vm553, %v1491, -inf
    %1498 = vmax.xlane.f32.xlu0 %v1497
    %v1499 = vpop.xlane.xlu0 %1498
    %v1500 = vsel %vm553, %v1494, -inf
    %1501 = vmax.xlane.f32.xlu0 %v1500
    %v1502 = vpop.xlane.xlu0 %1501
    %v1503 = vsub.f32 %v1491, %v1499
    %v1504 = vsub.f32 %v1494, %v1502
    %v1505 = vmul.f32 %v1503, 1.442695
    %v1506 = vpow.pop %v1505
    %v1507 = vmul.f32 %v1504, 1.442695
    %v1508 = vpow.pop %v1507
    %v1509 = vsel %vm553, %v1506, 0.0
    %1510 = vadd.xlane.f32.xlu0 %v1509
    %v1511 = vpop.xlane.xlu0 %1510
    %v1512 = vsel %vm553, %v1508, 0.0
    %1513 = vadd.xlane.f32.xlu0 %v1512
    %v1514 = vpop.xlane.xlu0 %1513
    %v1515 = vrcp.pop %v1511
    %v1516 = vrcp.pop %v1514
    %v1517 = vmul.f32 %v1506, %v1515
    %v1518 = vmul.f32 %v1508, %v1516
    %v1519 = vmul.f32 %v1444, %v507
    %v1520 = vmul.f32 %v1447, %v507
    %v1521 = vpack.c.bf16 %v1518, %v1517
    %v1522 = vpack.c.bf16 %v1520, %v1519
    %v1523 = vmul.f32 %v1450, %v584
    %v1524 = vmul.f32 %v1451, %v584
    %v1525 = vpack.c.bf16 %v1524, %v1523
    %1526 = vmatprep.subr.bf16.mxu0 0
    %1527 = vmatpush1.bf16.xpose.msra.mxu0 0
    %1528 = vmatprep.subr.bf16.mxu0 0
    %1529 = vmatpush1.bf16.xpose.msra.mxu0 0
    %1530 = vmatprep.subr.bf16.mxu0 0
    %1531 = vmatpush1.bf16.xpose.msra.mxu0 0
    %1532 = vmatprep.subr.bf16.mxu0 0
    %1533 = vmatpush1.bf16.xpose.msra.mxu0 0
    %1534 = vmatprep.subr.bf16.mxu0 0
    %1535 = vmatpush1.bf16.xpose.msra.mxu0 0
    %1536 = vmatprep.subr.bf16.mxu0 0
    %1537 = vmatpush1.bf16.xpose.msra.mxu0 0
    %1538 = vmatprep.subr.bf16.mxu0 0
    %1539 = vmatpush1.bf16.xpose.msra.mxu0 0
    %1540 = vmatprep.subr.bf16.mxu0 0
    %1541 = vmatpush1.bf16.xpose.msra.mxu0 %v1455
    %1542 = vmatprep.subr.bf16.mxu0 0
    %1543 = vmatpush2.bf16.xpose.msra.mxu0 0
    %1544 = vmatprep.subr.bf16.mxu0 0
    %1545 = vmatpush2.bf16.xpose.msra.mxu0 0
    %1546 = vmatprep.subr.bf16.mxu0 0
    %1547 = vmatpush2.bf16.xpose.msra.mxu0 0
    %1548 = vmatprep.subr.bf16.mxu0 0
    %1549 = vmatpush2.bf16.xpose.msra.mxu0 0
    %1550 = vmatprep.subr.bf16.mxu0 0
    %1551 = vmatpush2.bf16.xpose.msra.mxu0 0
    %1552 = vmatprep.subr.bf16.mxu0 0
    %1553 = vmatpush2.bf16.xpose.msra.mxu0 0
    %1554 = vmatprep.subr.bf16.mxu0 0
    %1555 = vmatpush2.bf16.xpose.msra.mxu0 0
    %1556 = vmatprep.subr.bf16.mxu0 0
    %1557 = vmatpush2.bf16.xpose.msra.mxu0 0
    %1558 = vmatprep.mubr.bf16.mxu0 0
    %1559 = vmatmul.mubr.bf16.gmra.mxu0 %v1525
    %v1560 = vpop.f32.mrf.mxu0
    %v1561 = vadd.f32 %v235, %v1560
    %v1562 = vpop.f32.mrf.mxu0
    %v1563 = vpop.f32.mrf.mxu0
    %v1564 = vadd.f32 %v236, %v1563
    %v1565 = vpop.f32.mrf.mxu0
    %1566 = vdwg.mxu0
    %v1567 = vsel %vm553, %v1561, -inf
    %1568 = vmax.xlane.f32.xlu0 %v1567
    %v1569 = vpop.xlane.xlu0 %1568
    %v1570 = vsel %vm553, %v1564, -inf
    %1571 = vmax.xlane.f32.xlu0 %v1570
    %v1572 = vpop.xlane.xlu0 %1571
    %v1573 = vsub.f32 %v1561, %v1569
    %v1574 = vsub.f32 %v1564, %v1572
    %v1575 = vmul.f32 %v1573, 1.442695
    %v1576 = vpow.pop %v1575
    %v1577 = vmul.f32 %v1574, 1.442695
    %v1578 = vpow.pop %v1577
    %v1579 = vsel %vm553, %v1576, 0.0
    %1580 = vadd.xlane.f32.xlu0 %v1579
    %v1581 = vpop.xlane.xlu0 %1580
    %v1582 = vsel %vm553, %v1578, 0.0
    %1583 = vadd.xlane.f32.xlu0 %v1582
    %v1584 = vpop.xlane.xlu0 %1583
    %v1585 = vrcp.pop %v1581
    %v1586 = vrcp.pop %v1584
    %v1587 = vmul.f32 %v1576, %v1585
    %v1588 = vmul.f32 %v1578, %v1586
    %v1589 = vmul.f32 %v1444, %v584
    %v1590 = vmul.f32 %v1447, %v584
    %v1591 = vpack.c.bf16 %v1588, %v1587
    %v1592 = vpack.c.bf16 %v1590, %v1589
    %v1594 = vsel %vm553, %v1591, 0
    %1596 = vmatprep.subr.bf16.mxu0 0
    %1597 = vmatpush1.bf16.msra.mxu0 0
    %1598 = vmatprep.subr.bf16.mxu0 0
    %1599 = vmatpush1.bf16.msra.mxu0 0
    %1600 = vmatprep.subr.bf16.mxu0 0
    %1601 = vmatpush1.bf16.msra.mxu0 0
    %1602 = vmatprep.subr.bf16.mxu0 0
    %1603 = vmatpush1.bf16.msra.mxu0 0
    %1604 = vmatprep.subr.bf16.mxu0 0
    %1605 = vmatpush1.bf16.msra.mxu0 0
    %1606 = vmatprep.subr.bf16.mxu0 0
    %1607 = vmatpush1.bf16.msra.mxu0 0
    %1608 = vmatprep.subr.bf16.mxu0 0
    %1609 = vmatpush1.bf16.msra.mxu0 0
    %1610 = vmatprep.subr.bf16.mxu0 0
    %1611 = vmatpush1.bf16.msra.mxu0 %v1592
    %1612 = vmatprep.subr.bf16.mxu0 0
    %1613 = vmatpush2.bf16.msra.mxu0 0
    %1614 = vmatprep.subr.bf16.mxu0 0
    %1615 = vmatpush2.bf16.msra.mxu0 0
    %1616 = vmatprep.subr.bf16.mxu0 0
    %1617 = vmatpush2.bf16.msra.mxu0 0
    %1618 = vmatprep.subr.bf16.mxu0 0
    %1619 = vmatpush2.bf16.msra.mxu0 0
    %1620 = vmatprep.subr.bf16.mxu0 0
    %1621 = vmatpush2.bf16.msra.mxu0 0
    %1622 = vmatprep.subr.bf16.mxu0 0
    %1623 = vmatpush2.bf16.msra.mxu0 0
    %1624 = vmatprep.subr.bf16.mxu0 0
    %1625 = vmatpush2.bf16.msra.mxu0 0
    %1626 = vmatprep.subr.bf16.mxu0 0
    %1627 = vmatpush2.bf16.msra.mxu0 0
    %1628 = vmatprep.mubr.bf16.mxu0 0
    %1629 = vmatmul.mubr.bf16.gmra.mxu0 %v1594
    %v1630 = vpop.f32.mrf.mxu0
    %v1631 = vadd.f32 0.0, %v1630
    %v1632 = vpop.f32.mrf.mxu0
    %v1633 = vpop.f32.mrf.mxu0
    %v1634 = vadd.f32 0.0, %v1633
    %v1635 = vpop.f32.mrf.mxu0
    %1636 = vdwg.mxu0
    %v1638 = vsel %vm553, %v1521, 0
    %1640 = vmatprep.subr.bf16.mxu0 0
    %1641 = vmatpush1.bf16.msra.mxu0 0
    %1642 = vmatprep.subr.bf16.mxu0 0
    %1643 = vmatpush1.bf16.msra.mxu0 0
    %1644 = vmatprep.subr.bf16.mxu0 0
    %1645 = vmatpush1.bf16.msra.mxu0 0
    %1646 = vmatprep.subr.bf16.mxu0 0
    %1647 = vmatpush1.bf16.msra.mxu0 0
    %1648 = vmatprep.subr.bf16.mxu0 0
    %1649 = vmatpush1.bf16.msra.mxu0 0
    %1650 = vmatprep.subr.bf16.mxu0 0
    %1651 = vmatpush1.bf16.msra.mxu0 0
    %1652 = vmatprep.subr.bf16.mxu0 0
    %1653 = vmatpush1.bf16.msra.mxu0 0
    %1654 = vmatprep.subr.bf16.mxu0 0
    %1655 = vmatpush1.bf16.msra.mxu0 %v1522
    %1656 = vmatprep.subr.bf16.mxu0 0
    %1657 = vmatpush2.bf16.msra.mxu0 0
    %1658 = vmatprep.subr.bf16.mxu0 0
    %1659 = vmatpush2.bf16.msra.mxu0 0
    %1660 = vmatprep.subr.bf16.mxu0 0
    %1661 = vmatpush2.bf16.msra.mxu0 0
    %1662 = vmatprep.subr.bf16.mxu0 0
    %1663 = vmatpush2.bf16.msra.mxu0 0
    %1664 = vmatprep.subr.bf16.mxu0 0
    %1665 = vmatpush2.bf16.msra.mxu0 0
    %1666 = vmatprep.subr.bf16.mxu0 0
    %1667 = vmatpush2.bf16.msra.mxu0 0
    %1668 = vmatprep.subr.bf16.mxu0 0
    %1669 = vmatpush2.bf16.msra.mxu0 0
    %1670 = vmatprep.subr.bf16.mxu0 0
    %1671 = vmatpush2.bf16.msra.mxu0 0
    %1672 = vmatprep.mubr.bf16.mxu0 0
    %1673 = vmatmul.mubr.bf16.gmra.mxu0 %v1638
    %v1674 = vpop.f32.mrf.mxu0
    %v1675 = vadd.f32 %v1631, %v1674
    %v1676 = vpop.f32.mrf.mxu0
    %v1677 = vpop.f32.mrf.mxu0
    %v1678 = vadd.f32 %v1634, %v1677
    %v1679 = vpop.f32.mrf.mxu0
    %1680 = vdwg.mxu0
    %s1681 = scalar_lea.vmem [#allocation10], 64
    %v1682 = vld [vmem:[%s1681] sm:$0xf]
    %v1683 = vld [vmem:[%s1681 + $0x4] sm:$0xf]
    %v1684 = vld [vmem:[%s1681 + $0x8] sm:$0xf]
    %v1685 = vld [vmem:[%s1681 + $0xc] sm:$0xf]
    %v1686 = vld [vmem:[%s1681 + $0x10] sm:$0xf]
    %v1687 = vld [vmem:[%s1681 + $0x14] sm:$0xf]
    %v1688 = vld [vmem:[%s1681 + $0x18] sm:$0xf]
    %v1689 = vld [vmem:[%s1681 + $0x1c] sm:$0xf]
    %v1690 = vld [vmem:[%s1681 + $0x20] sm:$0xf]
    %v1691 = vld [vmem:[%s1681 + $0x24] sm:$0xf]
    %v1692 = vld [vmem:[%s1681 + $0x28] sm:$0xf]
    %v1693 = vld [vmem:[%s1681 + $0x2c] sm:$0xf]
    %v1694 = vld [vmem:[%s1681 + $0x30] sm:$0xf]
    %v1695 = vld [vmem:[%s1681 + $0x34] sm:$0xf]
    %v1696 = vld [vmem:[%s1681 + $0x38] sm:$0xf]
    %v1697 = vld [vmem:[%s1681 + $0x3c] sm:$0xf]
    %v1698 = vpack.c.bf16 %v1678, %v1675
    %s1699 = scalar_lea.vmem [#allocation11], 1
    %v1700 = vld [vmem:[%s1699] sm:$0x1]
    %v1702 = vlaneseq
    %v1703 = vshrl.u32 %v1702, 7
    %v1704 = vsub.s32 0, %v1703
    %v1705 = vrot.slane %v1700, %v1704
    %v1723 = vunpack.c.l.b16 %v1682
    %v1724 = vunpack.c.l.b16 %v1683
    %v1725 = vunpack.c.l.b16 %v1684
    %v1726 = vunpack.c.l.b16 %v1685
    %v1727 = vunpack.c.l.b16 %v1686
    %v1728 = vunpack.c.l.b16 %v1687
    %v1729 = vunpack.c.l.b16 %v1688
    %v1730 = vunpack.c.l.b16 %v1689
    %v1731 = vunpack.c.l.b16 %v1690
    %v1732 = vunpack.c.l.b16 %v1691
    %v1733 = vunpack.c.l.b16 %v1692
    %v1734 = vunpack.c.l.b16 %v1693
    %v1735 = vunpack.c.l.b16 %v1694
    %v1736 = vunpack.c.l.b16 %v1695
    %v1737 = vunpack.c.l.b16 %v1696
    %v1738 = vunpack.c.l.b16 %v1697
    %v1739 = vpack.c.b16 %v1724, %v1723
    %v1740 = vpack.c.b16 %v1726, %v1725
    %v1741 = vpack.c.b16 %v1728, %v1727
    %v1742 = vpack.c.b16 %v1730, %v1729
    %v1743 = vpack.c.b16 %v1732, %v1731
    %v1744 = vpack.c.b16 %v1734, %v1733
    %v1745 = vpack.c.b16 %v1736, %v1735
    %v1746 = vpack.c.b16 %v1738, %v1737
    %1755 = vmatprep.subr.bf16.mxu0 0
    %1756 = vmatpush1.bf16.msra.mxu0 %v1746
    %1757 = vmatprep.subr.bf16.mxu0 0
    %1758 = vmatpush1.bf16.msra.mxu0 %v1745
    %1759 = vmatprep.subr.bf16.mxu0 0
    %1760 = vmatpush1.bf16.msra.mxu0 %v1744
    %1761 = vmatprep.subr.bf16.mxu0 0
    %1762 = vmatpush1.bf16.msra.mxu0 %v1743
    %1763 = vmatprep.subr.bf16.mxu0 0
    %1764 = vmatpush1.bf16.msra.mxu0 %v1742
    %1765 = vmatprep.subr.bf16.mxu0 0
    %1766 = vmatpush1.bf16.msra.mxu0 %v1741
    %1767 = vmatprep.subr.bf16.mxu0 0
    %1768 = vmatpush1.bf16.msra.mxu0 %v1740
    %1769 = vmatprep.subr.bf16.mxu0 0
    %1770 = vmatpush1.bf16.msra.mxu0 %v1739
    %1771 = vmatprep.subr.bf16.mxu0 0
    %1772 = vmatpush2.bf16.msra.mxu0 0
    %1773 = vmatprep.subr.bf16.mxu0 0
    %1774 = vmatpush2.bf16.msra.mxu0 0
    %1775 = vmatprep.subr.bf16.mxu0 0
    %1776 = vmatpush2.bf16.msra.mxu0 0
    %1777 = vmatprep.subr.bf16.mxu0 0
    %1778 = vmatpush2.bf16.msra.mxu0 0
    %1779 = vmatprep.subr.bf16.mxu0 0
    %1780 = vmatpush2.bf16.msra.mxu0 0
    %1781 = vmatprep.subr.bf16.mxu0 0
    %1782 = vmatpush2.bf16.msra.mxu0 0
    %1783 = vmatprep.subr.bf16.mxu0 0
    %1784 = vmatpush2.bf16.msra.mxu0 0
    %1785 = vmatprep.subr.bf16.mxu0 0
    %1786 = vmatpush2.bf16.msra.mxu0 0
    %1787 = vmatprep.mubr.bf16.mxu0 0
    %1788 = vmatmul.mubr.bf16.gmra.mxu0 %v1698
    %v1789 = vpop.f32.mrf.mxu0
    %v1790 = vadd.f32 %v1705, %v1789
    %v1791 = vpop.f32.mrf.mxu0
    %v1792 = vpop.f32.mrf.mxu0
    %v1793 = vadd.f32 %v1705, %v1792
    %v1794 = vpop.f32.mrf.mxu0
    %1795 = vdwg.mxu0
    %v1796 = vadd.f32 %v1184, %v1790
    %v1797 = vadd.f32 %v1185, %v1793
    %s1798 = scalar_lea.vmem %s7, 2
    %v1799 = vld [vmem:[%s1798] sm:$0x3]
    %1800 = vadd.xlane.f32.xlu0 %v1796
    %v1801 = vpop.xlane.xlu0 %1800
    %1802 = vadd.xlane.f32.xlu0 %v1797
    %v1803 = vpop.xlane.xlu0 %1802
    %v1804 = vmul.f32 %v1801, 0.03125
    %v1805 = vmul.f32 %v1803, 0.03125
    %v1806 = vmul.f32 %v1796, %v1796
    %v1807 = vmul.f32 %v1797, %v1797
    %1808 = vadd.xlane.f32.xlu0 %v1806
    %v1809 = vpop.xlane.xlu0 %1808
    %1810 = vadd.xlane.f32.xlu0 %v1807
    %v1811 = vpop.xlane.xlu0 %1810
    %v1812 = vmul.f32 %v1809, 0.03125
    %v1813 = vmul.f32 %v1811, 0.03125
    %v1814 = vmul.f32 %v1804, %v1804
    %v1815 = vmul.f32 %v1805, %v1805
    %v1816 = vsub.f32 %v1812, %v1814
    %v1817 = vsub.f32 %v1813, %v1815
    %v1818 = vmax.f32 %v1816, 0.0
    %v1819 = vmax.f32 %v1817, 0.0
    %v1820 = vsub.f32 %v1796, %v1804
    %v1821 = vsub.f32 %v1797, %v1805
    %v1822 = vadd.f32 %v1818, 1e-12
    %v1823 = vadd.f32 %v1819, 1e-12
    %v1824 = vrsqrt.pop %v1822
    %v1825 = vrsqrt.pop %v1823
    %v1826 = vmul.f32 %v1820, %v1824
    %v1827 = vmul.f32 %v1821, %v1825
    %v1828 = vlaneseq
    %v1829 = vshrl.u32 %v1828, 7
    %v1830 = vsub.s32 0, %v1829
    %v1831 = vrot.slane %v1799, %v1830
    %v1832 = vmul.f32 %v1826, %v1831
    %v1833 = vmul.f32 %v1827, %v1831
    %v1834 = vlaneseq
    %v1835 = vshrl.u32 %v1834, 7
    %v1836 = vsub.s32 1, %v1835
    %v1837 = vrot.slane %v1799, %v1836
    %v1838 = vadd.f32 %v1832, %v1837
    %v1839 = vadd.f32 %v1833, %v1837
    %s1840 = scalar_lea.vmem [#allocation13], 64
    %v1841 = vld [vmem:[%s1840] sm:$0xf]
    %v1842 = vld [vmem:[%s1840 + $0x4] sm:$0xf]
    %v1843 = vld [vmem:[%s1840 + $0x8] sm:$0xf]
    %v1844 = vld [vmem:[%s1840 + $0xc] sm:$0xf]
    %v1845 = vld [vmem:[%s1840 + $0x10] sm:$0xf]
    %v1846 = vld [vmem:[%s1840 + $0x14] sm:$0xf]
    %v1847 = vld [vmem:[%s1840 + $0x18] sm:$0xf]
    %v1848 = vld [vmem:[%s1840 + $0x1c] sm:$0xf]
    %v1849 = vld [vmem:[%s1840 + $0x20] sm:$0xf]
    %v1850 = vld [vmem:[%s1840 + $0x24] sm:$0xf]
    %v1851 = vld [vmem:[%s1840 + $0x28] sm:$0xf]
    %v1852 = vld [vmem:[%s1840 + $0x2c] sm:$0xf]
    %v1853 = vld [vmem:[%s1840 + $0x30] sm:$0xf]
    %v1854 = vld [vmem:[%s1840 + $0x34] sm:$0xf]
    %v1855 = vld [vmem:[%s1840 + $0x38] sm:$0xf]
    %v1856 = vld [vmem:[%s1840 + $0x3c] sm:$0xf]
    %v1857 = vpack.c.bf16 %v1839, %v1838
    %s1858 = scalar_lea.vmem %s9, 1
    %v1859 = vld [vmem:[%s1858] sm:$0x1]
    %v1861 = vlaneseq
    %v1862 = vshrl.u32 %v1861, 7
    %v1863 = vsub.s32 0, %v1862
    %v1864 = vrot.slane %v1859, %v1863
    %v1882 = vunpack.c.l.b16 %v1841
    %v1883 = vunpack.c.l.b16 %v1842
    %v1884 = vunpack.c.l.b16 %v1843
    %v1885 = vunpack.c.l.b16 %v1844
    %v1886 = vunpack.c.l.b16 %v1845
    %v1887 = vunpack.c.l.b16 %v1846
    %v1888 = vunpack.c.l.b16 %v1847
    %v1889 = vunpack.c.l.b16 %v1848
    %v1890 = vunpack.c.l.b16 %v1849
    %v1891 = vunpack.c.l.b16 %v1850
    %v1892 = vunpack.c.l.b16 %v1851
    %v1893 = vunpack.c.l.b16 %v1852
    %v1894 = vunpack.c.l.b16 %v1853
    %v1895 = vunpack.c.l.b16 %v1854
    %v1896 = vunpack.c.l.b16 %v1855
    %v1897 = vunpack.c.l.b16 %v1856
    %v1898 = vpack.c.b16 %v1883, %v1882
    %v1899 = vpack.c.b16 %v1885, %v1884
    %v1900 = vpack.c.b16 %v1887, %v1886
    %v1901 = vpack.c.b16 %v1889, %v1888
    %v1902 = vpack.c.b16 %v1891, %v1890
    %v1903 = vpack.c.b16 %v1893, %v1892
    %v1904 = vpack.c.b16 %v1895, %v1894
    %v1905 = vpack.c.b16 %v1897, %v1896
    %1914 = vmatprep.subr.bf16.mxu0 0
    %1915 = vmatpush1.bf16.msra.mxu0 %v1905
    %1916 = vmatprep.subr.bf16.mxu0 0
    %1917 = vmatpush1.bf16.msra.mxu0 %v1904
    %1918 = vmatprep.subr.bf16.mxu0 0
    %1919 = vmatpush1.bf16.msra.mxu0 %v1903
    %1920 = vmatprep.subr.bf16.mxu0 0
    %1921 = vmatpush1.bf16.msra.mxu0 %v1902
    %1922 = vmatprep.subr.bf16.mxu0 0
    %1923 = vmatpush1.bf16.msra.mxu0 %v1901
    %1924 = vmatprep.subr.bf16.mxu0 0
    %1925 = vmatpush1.bf16.msra.mxu0 %v1900
    %1926 = vmatprep.subr.bf16.mxu0 0
    %1927 = vmatpush1.bf16.msra.mxu0 %v1899
    %1928 = vmatprep.subr.bf16.mxu0 0
    %1929 = vmatpush1.bf16.msra.mxu0 %v1898
    %1930 = vmatprep.subr.bf16.mxu0 0
    %1931 = vmatpush2.bf16.msra.mxu0 0
    %1932 = vmatprep.subr.bf16.mxu0 0
    %1933 = vmatpush2.bf16.msra.mxu0 0
    %1934 = vmatprep.subr.bf16.mxu0 0
    %1935 = vmatpush2.bf16.msra.mxu0 0
    %1936 = vmatprep.subr.bf16.mxu0 0
    %1937 = vmatpush2.bf16.msra.mxu0 0
    %1938 = vmatprep.subr.bf16.mxu0 0
    %1939 = vmatpush2.bf16.msra.mxu0 0
    %1940 = vmatprep.subr.bf16.mxu0 0
    %1941 = vmatpush2.bf16.msra.mxu0 0
    %1942 = vmatprep.subr.bf16.mxu0 0
    %1943 = vmatpush2.bf16.msra.mxu0 0
    %1944 = vmatprep.subr.bf16.mxu0 0
    %1945 = vmatpush2.bf16.msra.mxu0 0
    %1946 = vmatprep.mubr.bf16.mxu0 0
    %1947 = vmatmul.mubr.bf16.gmra.mxu0 %v1857
    %v1948 = vpop.f32.mrf.mxu0
    %v1949 = vadd.f32 %v1864, %v1948
    %v1950 = vpop.f32.mrf.mxu0
    %v1951 = vpop.f32.mrf.mxu0
    %v1952 = vadd.f32 %v1864, %v1951
    %v1953 = vpop.f32.mrf.mxu0
    %1954 = vdwg.mxu0
    %v1955 = vmul.f32 %v1949, 0.5
    %v1956 = vmul.f32 %v1952, 0.5
    %v1957 = vmul.f32 %v1949, 0.044715
    %v1958 = vmul.f32 %v1952, 0.044715
    %v1959 = vmul.f32 %v1957, %v1949
    %v1960 = vmul.f32 %v1958, %v1952
    %v1961 = vmul.f32 %v1959, %v1949
    %v1962 = vmul.f32 %v1960, %v1952
    %v1963 = vadd.f32 %v1949, %v1961
    %v1964 = vadd.f32 %v1952, %v1962
    %v1965 = vmul.f32 %v1963, 0.7978846
    %v1966 = vmul.f32 %v1964, 0.7978846
    %v1967 = vtanh.pop %v1965
    %v1968 = vtanh.pop %v1966
    %v1969 = vadd.f32 %v1967, 1.0
    %v1970 = vadd.f32 %v1968, 1.0
    %v1971 = vmul.f32 %v1955, %v1969
    %v1972 = vmul.f32 %v1956, %v1970
    %s1973 = scalar_lea.vmem [#allocation14], 64
    %v1974 = vld [vmem:[%s1973] sm:$0xf]
    %v1975 = vld [vmem:[%s1973 + $0x4] sm:$0xf]
    %v1976 = vld [vmem:[%s1973 + $0x8] sm:$0xf]
    %v1977 = vld [vmem:[%s1973 + $0xc] sm:$0xf]
    %v1978 = vld [vmem:[%s1973 + $0x10] sm:$0xf]
    %v1979 = vld [vmem:[%s1973 + $0x14] sm:$0xf]
    %v1980 = vld [vmem:[%s1973 + $0x18] sm:$0xf]
    %v1981 = vld [vmem:[%s1973 + $0x1c] sm:$0xf]
    %v1982 = vld [vmem:[%s1973 + $0x20] sm:$0xf]
    %v1983 = vld [vmem:[%s1973 + $0x24] sm:$0xf]
    %v1984 = vld [vmem:[%s1973 + $0x28] sm:$0xf]
    %v1985 = vld [vmem:[%s1973 + $0x2c] sm:$0xf]
    %v1986 = vld [vmem:[%s1973 + $0x30] sm:$0xf]
    %v1987 = vld [vmem:[%s1973 + $0x34] sm:$0xf]
    %v1988 = vld [vmem:[%s1973 + $0x38] sm:$0xf]
    %v1989 = vld [vmem:[%s1973 + $0x3c] sm:$0xf]
    %v1990 = vpack.c.bf16 %v1972, %v1971
    %s1991 = scalar_lea.vmem %s11, 1
    %v1992 = vld [vmem:[%s1991] sm:$0x1]
    %v1994 = vlaneseq
    %v1995 = vshrl.u32 %v1994, 7
    %v1996 = vsub.s32 0, %v1995
    %v1997 = vrot.slane %v1992, %v1996
    %v2015 = vunpack.c.l.b16 %v1974
    %v2016 = vunpack.c.l.b16 %v1975
    %v2017 = vunpack.c.l.b16 %v1976
    %v2018 = vunpack.c.l.b16 %v1977
    %v2019 = vunpack.c.l.b16 %v1978
    %v2020 = vunpack.c.l.b16 %v1979
    %v2021 = vunpack.c.l.b16 %v1980
    %v2022 = vunpack.c.l.b16 %v1981
    %v2023 = vunpack.c.l.b16 %v1982
    %v2024 = vunpack.c.l.b16 %v1983
    %v2025 = vunpack.c.l.b16 %v1984
    %v2026 = vunpack.c.l.b16 %v1985
    %v2027 = vunpack.c.l.b16 %v1986
    %v2028 = vunpack.c.l.b16 %v1987
    %v2029 = vunpack.c.l.b16 %v1988
    %v2030 = vunpack.c.l.b16 %v1989
    %v2031 = vpack.c.b16 %v2016, %v2015
    %v2032 = vpack.c.b16 %v2018, %v2017
    %v2033 = vpack.c.b16 %v2020, %v2019
    %v2034 = vpack.c.b16 %v2022, %v2021
    %v2035 = vpack.c.b16 %v2024, %v2023
    %v2036 = vpack.c.b16 %v2026, %v2025
    %v2037 = vpack.c.b16 %v2028, %v2027
    %v2038 = vpack.c.b16 %v2030, %v2029
    %2047 = vmatprep.subr.bf16.mxu0 0
    %2048 = vmatpush1.bf16.msra.mxu0 %v2038
    %2049 = vmatprep.subr.bf16.mxu0 0
    %2050 = vmatpush1.bf16.msra.mxu0 %v2037
    %2051 = vmatprep.subr.bf16.mxu0 0
    %2052 = vmatpush1.bf16.msra.mxu0 %v2036
    %2053 = vmatprep.subr.bf16.mxu0 0
    %2054 = vmatpush1.bf16.msra.mxu0 %v2035
    %2055 = vmatprep.subr.bf16.mxu0 0
    %2056 = vmatpush1.bf16.msra.mxu0 %v2034
    %2057 = vmatprep.subr.bf16.mxu0 0
    %2058 = vmatpush1.bf16.msra.mxu0 %v2033
    %2059 = vmatprep.subr.bf16.mxu0 0
    %2060 = vmatpush1.bf16.msra.mxu0 %v2032
    %2061 = vmatprep.subr.bf16.mxu0 0
    %2062 = vmatpush1.bf16.msra.mxu0 %v2031
    %2063 = vmatprep.subr.bf16.mxu0 0
    %2064 = vmatpush2.bf16.msra.mxu0 0
    %2065 = vmatprep.subr.bf16.mxu0 0
    %2066 = vmatpush2.bf16.msra.mxu0 0
    %2067 = vmatprep.subr.bf16.mxu0 0
    %2068 = vmatpush2.bf16.msra.mxu0 0
    %2069 = vmatprep.subr.bf16.mxu0 0
    %2070 = vmatpush2.bf16.msra.mxu0 0
    %2071 = vmatprep.subr.bf16.mxu0 0
    %2072 = vmatpush2.bf16.msra.mxu0 0
    %2073 = vmatprep.subr.bf16.mxu0 0
    %2074 = vmatpush2.bf16.msra.mxu0 0
    %2075 = vmatprep.subr.bf16.mxu0 0
    %2076 = vmatpush2.bf16.msra.mxu0 0
    %2077 = vmatprep.subr.bf16.mxu0 0
    %2078 = vmatpush2.bf16.msra.mxu0 0
    %2079 = vmatprep.mubr.bf16.mxu0 0
    %2080 = vmatmul.mubr.bf16.gmra.mxu0 %v1990
    %v2081 = vpop.f32.mrf.mxu0
    %v2082 = vadd.f32 %v1997, %v2081
    %v2083 = vpop.f32.mrf.mxu0
    %v2084 = vpop.f32.mrf.mxu0
    %v2085 = vadd.f32 %v1997, %v2084
    %v2086 = vpop.f32.mrf.mxu0
    %2087 = vdwg.mxu0
    %v2088 = vadd.f32 %v1838, %v2082
    %v2089 = vadd.f32 %v1839, %v2085
    %s2090 = scalar_lea.vmem %s12, 2
    %v2091 = vld [vmem:[%s2090] sm:$0x3]
    %2092 = vadd.xlane.f32.xlu0 %v2088
    %v2093 = vpop.xlane.xlu0 %2092
    %2094 = vadd.xlane.f32.xlu0 %v2089
    %v2095 = vpop.xlane.xlu0 %2094
    %v2096 = vmul.f32 %v2093, 0.03125
    %v2097 = vmul.f32 %v2095, 0.03125
    %v2098 = vmul.f32 %v2088, %v2088
    %v2099 = vmul.f32 %v2089, %v2089
    %2100 = vadd.xlane.f32.xlu0 %v2098
    %v2101 = vpop.xlane.xlu0 %2100
    %2102 = vadd.xlane.f32.xlu0 %v2099
    %v2103 = vpop.xlane.xlu0 %2102
    %v2104 = vmul.f32 %v2101, 0.03125
    %v2105 = vmul.f32 %v2103, 0.03125
    %v2106 = vmul.f32 %v2096, %v2096
    %v2107 = vmul.f32 %v2097, %v2097
    %v2108 = vsub.f32 %v2104, %v2106
    %v2109 = vsub.f32 %v2105, %v2107
    %v2110 = vmax.f32 %v2108, 0.0
    %v2111 = vmax.f32 %v2109, 0.0
    %v2112 = vsub.f32 %v2088, %v2096
    %v2113 = vsub.f32 %v2089, %v2097
    %v2114 = vadd.f32 %v2110, 1e-12
    %v2115 = vadd.f32 %v2111, 1e-12
    %v2116 = vrsqrt.pop %v2114
    %v2117 = vrsqrt.pop %v2115
    %v2118 = vmul.f32 %v2112, %v2116
    %v2119 = vmul.f32 %v2113, %v2117
    %v2120 = vlaneseq
    %v2121 = vshrl.u32 %v2120, 7
    %v2122 = vsub.s32 0, %v2121
    %v2123 = vrot.slane %v2091, %v2122
    %v2124 = vmul.f32 %v2118, %v2123
    %v2125 = vmul.f32 %v2119, %v2123
    %v2126 = vlaneseq
    %v2127 = vshrl.u32 %v2126, 7
    %v2128 = vsub.s32 1, %v2127
    %v2129 = vrot.slane %v2091, %v2128
    %v2130 = vadd.f32 %v2124, %v2129
    %v2131 = vadd.f32 %v2125, %v2129
    %v2133 = vrot.slane %v2131, 7
    %vm2135 = vcmask 1040384
    %v2136 = vsel %vm2135, %v2130, %v2133
    %v2137 = vld [vmem:[#allocation16] sm:$0xf]
    %v2138 = vld [vmem:[#allocation16 + $0x4] sm:$0xf]
    %v2139 = vld [vmem:[#allocation16 + $0x8] sm:$0xf]
    %v2140 = vld [vmem:[#allocation16 + $0xc] sm:$0xf]
    %v2141 = vld [vmem:[#allocation16 + $0x10] sm:$0xf]
    %v2142 = vld [vmem:[#allocation16 + $0x14] sm:$0xf]
    %v2143 = vld [vmem:[#allocation16 + $0x18] sm:$0xf]
    %v2144 = vld [vmem:[#allocation16 + $0x1c] sm:$0xf]
    %v2145 = vld [vmem:[#allocation16 + $0x20] sm:$0xf]
    %v2146 = vld [vmem:[#allocation16 + $0x24] sm:$0xf]
    %v2147 = vld [vmem:[#allocation16 + $0x28] sm:$0xf]
    %v2148 = vld [vmem:[#allocation16 + $0x2c] sm:$0xf]
    %v2149 = vld [vmem:[#allocation16 + $0x30] sm:$0xf]
    %v2150 = vld [vmem:[#allocation16 + $0x34] sm:$0xf]
    %v2151 = vld [vmem:[#allocation16 + $0x38] sm:$0xf]
    %v2152 = vld [vmem:[#allocation16 + $0x3c] sm:$0xf]
    %v2153 = vpack.c.bf16 %v2136, %v2136
    %v2154 = vld [vmem:[%s14] sm:$0x1]
    %v2156 = vlaneseq
    %v2157 = vshrl.u32 %v2156, 7
    %v2158 = vsub.s32 0, %v2157
    %v2159 = vrot.slane %v2154, %v2158
    %v2177 = vunpack.c.l.b16 %v2137
    %v2178 = vunpack.c.l.b16 %v2138
    %v2179 = vunpack.c.l.b16 %v2139
    %v2180 = vunpack.c.l.b16 %v2140
    %v2181 = vunpack.c.l.b16 %v2141
    %v2182 = vunpack.c.l.b16 %v2142
    %v2183 = vunpack.c.l.b16 %v2143
    %v2184 = vunpack.c.l.b16 %v2144
    %v2185 = vunpack.c.l.b16 %v2145
    %v2186 = vunpack.c.l.b16 %v2146
    %v2187 = vunpack.c.l.b16 %v2147
    %v2188 = vunpack.c.l.b16 %v2148
    %v2189 = vunpack.c.l.b16 %v2149
    %v2190 = vunpack.c.l.b16 %v2150
    %v2191 = vunpack.c.l.b16 %v2151
    %v2192 = vunpack.c.l.b16 %v2152
    %v2193 = vpack.c.b16 %v2178, %v2177
    %v2194 = vpack.c.b16 %v2180, %v2179
    %v2195 = vpack.c.b16 %v2182, %v2181
    %v2196 = vpack.c.b16 %v2184, %v2183
    %v2197 = vpack.c.b16 %v2186, %v2185
    %v2198 = vpack.c.b16 %v2188, %v2187
    %v2199 = vpack.c.b16 %v2190, %v2189
    %v2200 = vpack.c.b16 %v2192, %v2191
    %2209 = vmatprep.subr.bf16.mxu0 0
    %2210 = vmatpush1.bf16.msra.mxu0 %v2200
    %2211 = vmatprep.subr.bf16.mxu0 0
    %2212 = vmatpush1.bf16.msra.mxu0 %v2199
    %2213 = vmatprep.subr.bf16.mxu0 0
    %2214 = vmatpush1.bf16.msra.mxu0 %v2198
    %2215 = vmatprep.subr.bf16.mxu0 0
    %2216 = vmatpush1.bf16.msra.mxu0 %v2197
    %2217 = vmatprep.subr.bf16.mxu0 0
    %2218 = vmatpush1.bf16.msra.mxu0 %v2196
    %2219 = vmatprep.subr.bf16.mxu0 0
    %2220 = vmatpush1.bf16.msra.mxu0 %v2195
    %2221 = vmatprep.subr.bf16.mxu0 0
    %2222 = vmatpush1.bf16.msra.mxu0 %v2194
    %2223 = vmatprep.subr.bf16.mxu0 0
    %2224 = vmatpush1.bf16.msra.mxu0 %v2193
    %2225 = vmatprep.subr.bf16.mxu0 0
    %2226 = vmatpush2.bf16.msra.mxu0 0
    %2227 = vmatprep.subr.bf16.mxu0 0
    %2228 = vmatpush2.bf16.msra.mxu0 0
    %2229 = vmatprep.subr.bf16.mxu0 0
    %2230 = vmatpush2.bf16.msra.mxu0 0
    %2231 = vmatprep.subr.bf16.mxu0 0
    %2232 = vmatpush2.bf16.msra.mxu0 0
    %2233 = vmatprep.subr.bf16.mxu0 0
    %2234 = vmatpush2.bf16.msra.mxu0 0
    %2235 = vmatprep.subr.bf16.mxu0 0
    %2236 = vmatpush2.bf16.msra.mxu0 0
    %2237 = vmatprep.subr.bf16.mxu0 0
    %2238 = vmatpush2.bf16.msra.mxu0 0
    %2239 = vmatprep.subr.bf16.mxu0 0
    %2240 = vmatpush2.bf16.msra.mxu0 0
    %2241 = vmatprep.mubr.bf16.mxu0 0
    %2242 = vmatmul.mubr.bf16.gmra.mxu0 %v2153
    %v2243 = vpop.f32.mrf.mxu0
    %v2244 = vadd.f32 %v2159, %v2243
    %v2245 = vpop.f32.mrf.mxu0
    %v2246 = vpop.f32.mrf.mxu0
    %v2247 = vpop.f32.mrf.mxu0
    %2248 = vdwg.mxu0
    %v2249 = vtanh.pop %v2244
    %v2250 = vld [vmem:[#allocation17] sm:$0xf]
    %v2251 = vld [vmem:[#allocation17 + $0x4] sm:$0xf]
    %v2252 = vld [vmem:[#allocation17 + $0x8] sm:$0xf]
    %v2253 = vld [vmem:[#allocation17 + $0xc] sm:$0xf]
    %v2254 = vld [vmem:[#allocation17 + $0x10] sm:$0xf]
    %v2255 = vld [vmem:[#allocation17 + $0x14] sm:$0xf]
    %v2256 = vld [vmem:[#allocation17 + $0x18] sm:$0xf]
    %v2257 = vld [vmem:[#allocation17 + $0x1c] sm:$0xf]
    %v2258 = vld [vmem:[#allocation17 + $0x20] sm:$0xf]
    %v2259 = vld [vmem:[#allocation17 + $0x24] sm:$0xf]
    %v2260 = vld [vmem:[#allocation17 + $0x28] sm:$0xf]
    %v2261 = vld [vmem:[#allocation17 + $0x2c] sm:$0xf]
    %v2262 = vld [vmem:[#allocation17 + $0x30] sm:$0xf]
    %v2263 = vld [vmem:[#allocation17 + $0x34] sm:$0xf]
    %v2264 = vld [vmem:[#allocation17 + $0x38] sm:$0xf]
    %v2265 = vld [vmem:[#allocation17 + $0x3c] sm:$0xf]
    %v2266 = vpack.c.bf16 %v2249, %v2249
    %v2267 = vld [vmem:[%s16] sm:$0x1]
    %v2269 = vlaneseq
    %v2270 = vshrl.u32 %v2269, 7
    %v2271 = vsub.s32 0, %v2270
    %v2272 = vrot.slane %v2267, %v2271
    %v2290 = vunpack.c.l.b16 %v2250
    %v2291 = vunpack.c.l.b16 %v2251
    %v2292 = vunpack.c.l.b16 %v2252
    %v2293 = vunpack.c.l.b16 %v2253
    %v2294 = vunpack.c.l.b16 %v2254
    %v2295 = vunpack.c.l.b16 %v2255
    %v2296 = vunpack.c.l.b16 %v2256
    %v2297 = vunpack.c.l.b16 %v2257
    %v2298 = vunpack.c.l.b16 %v2258
    %v2299 = vunpack.c.l.b16 %v2259
    %v2300 = vunpack.c.l.b16 %v2260
    %v2301 = vunpack.c.l.b16 %v2261
    %v2302 = vunpack.c.l.b16 %v2262
    %v2303 = vunpack.c.l.b16 %v2263
    %v2304 = vunpack.c.l.b16 %v2264
    %v2305 = vunpack.c.l.b16 %v2265
    %v2306 = vpack.c.b16 %v2291, %v2290
    %v2307 = vpack.c.b16 %v2293, %v2292
    %v2308 = vpack.c.b16 %v2295, %v2294
    %v2309 = vpack.c.b16 %v2297, %v2296
    %v2310 = vpack.c.b16 %v2299, %v2298
    %v2311 = vpack.c.b16 %v2301, %v2300
    %v2312 = vpack.c.b16 %v2303, %v2302
    %v2313 = vpack.c.b16 %v2305, %v2304
    %2322 = vmatprep.subr.bf16.mxu0 0
    %2323 = vmatpush1.bf16.msra.mxu0 %v2313
    %2324 = vmatprep.subr.bf16.mxu0 0
    %2325 = vmatpush1.bf16.msra.mxu0 %v2312
    %2326 = vmatprep.subr.bf16.mxu0 0
    %2327 = vmatpush1.bf16.msra.mxu0 %v2311
    %2328 = vmatprep.subr.bf16.mxu0 0
    %2329 = vmatpush1.bf16.msra.mxu0 %v2310
    %2330 = vmatprep.subr.bf16.mxu0 0
    %2331 = vmatpush1.bf16.msra.mxu0 %v2309
    %2332 = vmatprep.subr.bf16.mxu0 0
    %2333 = vmatpush1.bf16.msra.mxu0 %v2308
    %2334 = vmatprep.subr.bf16.mxu0 0
    %2335 = vmatpush1.bf16.msra.mxu0 %v2307
    %2336 = vmatprep.subr.bf16.mxu0 0
    %2337 = vmatpush1.bf16.msra.mxu0 %v2306
    %2338 = vmatprep.subr.bf16.mxu0 0
    %2339 = vmatpush2.bf16.msra.mxu0 0
    %2340 = vmatprep.subr.bf16.mxu0 0
    %2341 = vmatpush2.bf16.msra.mxu0 0
    %2342 = vmatprep.subr.bf16.mxu0 0
    %2343 = vmatpush2.bf16.msra.mxu0 0
    %2344 = vmatprep.subr.bf16.mxu0 0
    %2345 = vmatpush2.bf16.msra.mxu0 0
    %2346 = vmatprep.subr.bf16.mxu0 0
    %2347 = vmatpush2.bf16.msra.mxu0 0
    %2348 = vmatprep.subr.bf16.mxu0 0
    %2349 = vmatpush2.bf16.msra.mxu0 0
    %2350 = vmatprep.subr.bf16.mxu0 0
    %2351 = vmatpush2.bf16.msra.mxu0 0
    %2352 = vmatprep.subr.bf16.mxu0 0
    %2353 = vmatpush2.bf16.msra.mxu0 0
    %2354 = vmatprep.mubr.bf16.mxu0 0
    %2355 = vmatmul.mubr.bf16.gmra.mxu0 %v2266
    %v2356 = vpop.f32.mrf.mxu0
    %v2357 = vadd.f32 %v2272, %v2356
    %v2358 = vpop.f32.mrf.mxu0
    %v2359 = vpop.f32.mrf.mxu0
    %v2360 = vpop.f32.mrf.mxu0
    %2361 = vdwg.mxu0
    %v2362 = vsub.f32 0.0, %v2357
    %v2363 = vmul.f32 %v2362, 1.442695
    %v2364 = vpow.pop %v2363
    %v2365 = vadd.f32 %v2364, 1.0
    %v2366 = vrcp.pop %v2365
    %v2367 = vmul.f32 1.0, %v2366
    %2368 = vst [vmem:[#allocation19] sm:$0x3] %v2367
    // Predicated region
    $region110: #{tpu_custom_call.1} parent=1 // pred_check
      _
    $region111: #{tpu_custom_call.1} parent=1 // pred_check_branch
      %2370 = sbr.rel (0) target = $region113
    $region112: #{tpu_custom_call.1} parent=1 // pred_region
      %s2372 = ssub.s32 32, 32
      %2373 = vsyncadd [#allocation4], %s2372
      %s2375 = sshll.u32 [#allocation19], 4
      %s2376 = int_to_ptr.vmem [resolvable:$true] %s2375
      %2378 = dma.vmem_to_hbm [thread:$0]  %s2376, 32, %s17, [#allocation4]
    $region113: #{tpu_custom_call.1} parent=1 // pred_fallthru
      _
    // Predicated region
    $region114: #{tpu_custom_call.1} parent=1 // pred_check
      _
    $region115: #{tpu_custom_call.1} parent=1 // pred_check_branch
      %2380 = sbr.rel (0) target = $region117
    $region116: #{tpu_custom_call.1} parent=1 // pred_region
      %2381 = dma.done [#allocation4], 32
    $region117: #{tpu_custom_call.1} parent=1 // pred_fallthru
      _
    %2382 = vsyncpa [#allocation3], 1
    %2383 = vsyncpa [#allocation6], 1
    %2384 = vsyncpa [#allocation9], 1
    %2385 = vsyncpa [#allocation12], 1
    %2386 = vsyncpa [#allocation15], 1
    %2387 = vsyncpa [#allocation18], 1
    %2388 = vsyncpa [#allocation4], 1

</llo_original>
